<compile_context>
chip_gen: v6e
topology: v6e:2x2x1
jax: 0.10.0
libtpu: 0.0.40
codegen_flags: <defaults>
</compile_context>

<pallas_src>
import functools

import jax
import jax.numpy as jnp
from jax import lax
from jax.experimental import pallas as pl
from jax.experimental.pallas import tpu as pltpu


def _round_up(x, m):
    return (x + m - 1) // m * m


# ----------------------------------------------------------------------------
# Small cached probes / hardware queries.
# ----------------------------------------------------------------------------
_PRECISION_CACHE = None
_SKIP_OK = {}          # (use_error, cast_lhs, precision) -> bool


def _matmul_precision():
    """HIGH (3-pass bf16) if the Mosaic lowering accepts it, else HIGHEST."""
    global _PRECISION_CACHE
    if _PRECISION_CACHE is None:
        def probe(a_ref, b_ref, o_ref):
            o_ref[...] = jnp.dot(a_ref[...], b_ref[...],
                                 preferred_element_type=jnp.float32,
                                 precision=lax.Precision.HIGH)
        try:
            f = jax.jit(pl.pallas_call(
                probe, out_shape=jax.ShapeDtypeStruct((8, 128), jnp.float32)))
            jax.block_until_ready(f(jnp.zeros((8, 128), jnp.float32),
                                    jnp.zeros((128, 128), jnp.float32)))
            _PRECISION_CACHE = lax.Precision.HIGH
        except Exception:
            _PRECISION_CACHE = lax.Precision.HIGHEST
    return _PRECISION_CACHE


def _vmem_cap_bytes():
    """Per-generation VMEM cap with headroom (v7x: 64 MiB, v5e/v6e: 128 MiB)."""
    try:
        cap = int(pltpu.get_tpu_info().vmem_capacity_bytes)
    except Exception:
        cap = 64 << 20                       # safe on every generation
    return max(cap - (8 << 20), 32 << 20)


# ----------------------------------------------------------------------------
# Kernel: the full Jacobi loop in one invocation (no grid -> single-buffered
# inputs, resident lane-dense history, one HBM writeback).
# ----------------------------------------------------------------------------
def _jacobi_kernel(*refs, use_error, use_skip, cast_lhs, precision, maxiter):
    if use_error:
        (m_ref, r0_ref, e0_ref, od_ref, c0_ref, rtol_ref, inv_ref,
         hist_ref, r_s, e_s, flag_s) = refs
    else:
        (m_ref, r0_ref, c0_ref, rtol_ref, inv_ref,
         hist_ref, r_s, flag_s) = refs
        e0_ref = od_ref = e_s = None

    bs_p, hist_p = hist_ref.shape
    rtol = rtol_ref[...]                     # (bs_p, 1), pad rows hold 1.0
    inv_norm = inv_ref[...]                  # (bs_p, 1), pad rows hold 0.0
    col = lax.broadcasted_iota(jnp.int32, (bs_p, hist_p), 1)

    def crit_of(R, E):
        v = E if use_error else R
        return jnp.sqrt(jnp.sum(v * v, axis=1, keepdims=True)) * inv_norm

    def advance():
        """One Jacobi step on the residual recurrence; returns new criterion."""
        R = r_s[...]
        lhs = R.astype(m_ref.dtype) if cast_lhs else R
        Rn = jnp.dot(lhs, m_ref[...],                        # r <- r @ H^T
                     preferred_element_type=jnp.float32,
                     precision=precision)
        En = None
        if use_error:
            En = e_s[...] - od_ref[...] * R                  # e <- e - (w/d)*r
            e_s[...] = En
        r_s[...] = Rn
        return crit_of(Rn, En)

    # ---- init: state, column 0 of the history, running flag ----
    c0 = c0_ref[...]
    r_s[...] = r0_ref[...]
    if use_error:
        e_s[...] = e0_ref[...]
    hist_ref[...] = jnp.where(col == 0, c0, 0.0)             # zeros + column 0

    if use_skip:
        # Flag in SMEM; the whole step (matmul included) is skipped after
        # global convergence.
        flag_s[0] = jnp.max((c0 > rtol).astype(jnp.int32))

        def body(i, carry):
            @pl.when(flag_s[0] != 0)
            def _():
                crit = advance()
                hist_ref[...] = jnp.where(col == i + 1, crit, hist_ref[...])
                flag_s[0] = jnp.max((crit > rtol).astype(jnp.int32))
            return carry
    else:
        # Fallback: always compute; history writes and the flag are gated by a
        # (1, 1) VMEM flag.  Post-convergence r/e updates never reach the
        # output, so no blending of the big arrays is needed.
        flag_s[...] = jnp.max((c0 > rtol).astype(jnp.float32),
                              axis=0, keepdims=True)

        def body(i, carry):
            run = flag_s[...]                                 # (1, 1)
            crit = advance()
            keep = jnp.logical_and(col == i + 1, run > 0.5)
            hist_ref[...] = jnp.where(keep, crit, hist_ref[...])
            flag_s[...] = run * jnp.max((crit > rtol).astype(jnp.float32),
                                        axis=0, keepdims=True)
            return carry

    lax.fori_loop(0, maxiter, body, 0)


# ----------------------------------------------------------------------------
# Wrapper: hoisted prologue (diag, H, r0, norms, crit0), padding, specs.
# ----------------------------------------------------------------------------
def jacobi_history(A, b, x0, x_sol, rtol, *, omega, maxiter,
                   criterion='relative_residual', precision=None,
                   h_dtype=jnp.float32):
    """A: (bs,n,n) or (n,n); b, x0, x_sol: (bs,n); rtol: (bs,) or scalar.
    Returns the (bs, maxiter+1) convergence history (torch JacobiJit.forward)."""
    bs, n = b.shape
    maxiter = int(maxiter)
    omega = float(omega)
    use_error = (criterion == 'relative_error')

    A0 = (A[0] if A.ndim == 3 else A).astype(jnp.float32)    # torch: tau['A'][:1]
    b32 = b.astype(jnp.float32)
    x032 = x0.astype(jnp.float32)
    xs32 = x_sol.astype(jnp.float32)

    # --- one-time prologue (hoisted out of the kernel) ---
    d = jnp.diagonal(A0)                                      # (n,)
    # Kernel computes r_row @ M with M = H^T = (I - omega * A * D^-1)^T so the
    # in-kernel dot is a plain (1,0) contraction (no transposed operand).
    M = (jnp.eye(n, dtype=jnp.float32) - omega * (A0 / d[None, :])).T
    R0 = b32 - x032 @ A0.T                                    # initial residual
    if use_error:
        norm = jnp.linalg.norm(xs32, axis=1, keepdims=True)
        E0 = xs32 - x032
        crit0 = jnp.linalg.norm(E0, axis=1, keepdims=True) / norm
    else:
        norm = jnp.linalg.norm(b32, axis=1, keepdims=True)
        crit0 = jnp.linalg.norm(R0, axis=1, keepdims=True) / norm
    inv_norm = 1.0 / norm                                     # unguarded (as torch)
    rtol2 = jnp.broadcast_to(
        jnp.asarray(rtol, jnp.float32).reshape(-1, 1), (bs, 1))

    # --- pad to TPU-friendly shapes ---
    n_p = _round_up(n, 128)
    bs_p = _round_up(bs, 8)
    hist_p = _round_up(maxiter + 1, 128)                      # lane-dense history
    dn, db = n_p - n, bs_p - bs

    cast_lhs = (jnp.dtype(h_dtype) != jnp.dtype(jnp.float32))
    if precision is None:
        precision = None if cast_lhs else _matmul_precision()

    M_p = jnp.pad(M, ((0, dn), (0, dn))).astype(h_dtype)      # zero pad keeps math exact
    R0_p = jnp.pad(R0, ((0, db), (0, dn)))
    crit0_p = jnp.pad(crit0, ((0, db), (0, 0)))
    rtol_p = jnp.pad(rtol2, ((0, db), (0, 0)), constant_values=1.0)
    inv_p = jnp.pad(inv_norm, ((0, db), (0, 0)))              # 0 => pad rows give crit 0

    inputs = [M_p, R0_p]
    if use_error:
        E0_p = jnp.pad(E0, ((0, db), (0, dn)))
        od_p = jnp.pad((omega / d)[None, :], ((0, 0), (0, dn)))
        inputs += [E0_p, od_p]
    inputs += [crit0_p, rtol_p, inv_p]

    in_specs = [pl.BlockSpec(memory_space=pltpu.MemorySpace.VMEM)
                for _ in inputs]
    out_spec = pl.BlockSpec(memory_space=pltpu.MemorySpace.VMEM)

    # --- VMEM budget: single-buffered (no grid => no pipeline buffers) ---
    hsz = jnp.dtype(h_dtype).itemsize
    need = (n_p * n_p * hsz                                   # H (resident, 1 copy)
            + bs_p * n_p * 4 * (4 if use_error else 2)        # R0 + r scratch (+E0+e)
            + 8 * n_p * 4                                     # omega/d row (sublane pad)
            + 3 * bs_p * 128 * 4                              # crit0/rtol/inv (lane pad)
            + bs_p * hist_p * 4)                              # resident history output
    vmem_limit = int(min(max(need + (4 << 20), 32 << 20), _vmem_cap_bytes()))

    def build(use_skip):
        scratch = [pltpu.VMEM((bs_p, n_p), jnp.float32)]      # r
        if use_error:
            scratch.append(pltpu.VMEM((bs_p, n_p), jnp.float32))  # e = x_sol - x
        scratch.append(pltpu.SMEM((1,), jnp.int32) if use_skip
                       else pltpu.VMEM((1, 1), jnp.float32))  # running flag
        kernel = functools.partial(
            _jacobi_kernel, use_error=use_error, use_skip=use_skip,
            cast_lhs=cast_lhs, precision=precision, maxiter=maxiter)
        return jax.jit(pl.pallas_call(
            kernel,
            out_shape=jax.ShapeDtypeStruct((bs_p, hist_p), jnp.float32),
            in_specs=in_specs,
            out_specs=out_spec,
            scratch_shapes=scratch,
            compiler_params=pltpu.CompilerParams(vmem_limit_bytes=vmem_limit),
        ))

    key = (use_error, cast_lhs, str(precision))
    attempts = [True, False] if _SKIP_OK.get(key, True) else [False]
    hist = None
    last_err = None
    for use_skip in attempts:
        try:
            hist = jax.block_until_ready(build(use_skip)(*inputs))
            _SKIP_OK[key] = use_skip
            break
        except Exception as e:                                 # pragma: no cover
            last_err = e
            _SKIP_OK[key] = False
    if hist is None:
        raise last_err

    return hist[:bs, :maxiter + 1]                             # (bs, maxiter+1)


# ----------------------------------------------------------------------------
# Pure-numpy port of JacobiJit.forward for validation.
# ----------------------------------------------------------------------------
def reference_history(A0, b, x0, x_sol, rtol, omega, maxiter,
                      criterion='relative_residual'):
    import numpy as np
    A0 = np.asarray(A0, np.float32)
    b = np.asarray(b, np.float32)
    x = np.asarray(x0, np.float32).copy()
    x_sol = np.asarray(x_sol, np.float32)
    rtol = np.asarray(rtol, np.float32)
    bs, n = b.shape

    r = b - x @ A0.T
    xnorm = np.linalg.norm(x_sol, axis=1)
    bnorm = np.linalg.norm(b, axis=1)
    d = np.diag(A0)
    G = np.eye(n, dtype=np.float32) - omega * A0 / d[:, None]
    f = omega * b / d[None, :]

    rel_err = np.linalg.norm(x_sol - x, axis=1) / xnorm
    rel_res = np.linalg.norm(r, axis=1) / bnorm
    crit = rel_err if criterion == 'relative_error' else rel_res

    hist = np.zeros((bs, maxiter + 1), np.float32)
    hist[:, 0] = crit
    i = 0
    while i < maxiter and np.any(crit > rtol):
        x = x @ G.T + f
        r = b - x @ A0.T
        rel_err = np.linalg.norm(x_sol - x, axis=1) / xnorm
        rel_res = np.linalg.norm(r, axis=1) / bnorm
        crit = rel_err if criterion == 'relative_error' else rel_res
        i += 1
        hist[:, i] = crit
    return hist


if __name__ == "__main__":
    import numpy as np

    bs, n, maxiter = 2, 16, 12
    omega = 2.0 / 3.0
    key = jax.random.PRNGKey(0)
    k1, k2, k3 = jax.random.split(key, 3)

    # Diagonally dominant A so Jacobi converges (exercises the early stop).
    A0 = (0.1 * jax.random.normal(k1, (n, n), jnp.float32)
          + n * jnp.eye(n, dtype=jnp.float32))
    A = jnp.broadcast_to(A0, (bs, n, n))                  # tau['A'] is (bs, n, n)
    b = jax.random.normal(k2, (bs, n), jnp.float32)       # tau['b']
    x0 = jax.random.normal(k3, (bs, n), jnp.float32)      # theta
    x_sol = jnp.linalg.solve(A0, b.T).T                   # tau['x_sol']

    A0_np, b_np, x0_np, xs_np = (np.asarray(v) for v in (A0, b, x0, x_sol))

    for criterion in ("relative_residual", "relative_error"):
        # Choose rtol geometrically between two reference iterates so the
        # early-stop decision has a wide margin for any matmul precision mode.
        full = reference_history(A0_np, b_np, x0_np, xs_np,
                                 np.zeros(bs, np.float32), omega, maxiter,
                                 criterion)
        m = full.max(axis=0)
        rtol_val = float(np.sqrt(m[maxiter - 4] * m[maxiter - 3]))
        rtol = jnp.full((bs,), rtol_val, jnp.float32)

        hist = jacobi_history(A, b, x0, x_sol, rtol, omega=omega,
                              maxiter=maxiter, criterion=criterion)
        hist = np.asarray(jax.block_until_ready(hist))

        ref = reference_history(A0_np, b_np, x0_np, xs_np, np.asarray(rtol),
                                omega, maxiter, criterion)
        np.testing.assert_allclose(hist, ref, rtol=3e-2, atol=1e-5)

    print("KERNEL_OK")
</pallas_src>

<mosaic_0001>
module attributes {stable_mosaic.version = 11 : i64} {
  func.func @_jacobi_kernel(%arg0: memref<128x128xf32, #tpu.memory_space<vmem>>, %arg1: memref<8x128xf32, #tpu.memory_space<vmem>>, %arg2: memref<8x1xf32, #tpu.memory_space<vmem>>, %arg3: memref<8x1xf32, #tpu.memory_space<vmem>>, %arg4: memref<8x1xf32, #tpu.memory_space<vmem>>, %arg5: memref<8x128xf32, #tpu.memory_space<vmem>>, %arg6: memref<8x128xf32, #tpu.memory_space<vmem>>, %arg7: memref<1xi32, #tpu.memory_space<smem>>) attributes {dimension_semantics = [], scalar_prefetch = 0 : i64, scratch_operands = 2 : i64, tpu.core_type = #tpu.core_type<tc>} {
    %c0 = arith.constant 0 : index
    %c0_0 = arith.constant 0 : index
    %0 = vector.load %arg3[%c0, %c0_0] : memref<8x1xf32, #tpu.memory_space<vmem>>, vector<8x1xf32>
    %c0_1 = arith.constant 0 : index
    %c0_2 = arith.constant 0 : index
    %1 = vector.load %arg4[%c0_1, %c0_2] : memref<8x1xf32, #tpu.memory_space<vmem>>, vector<8x1xf32>
    %2 = tpu.iota {dimensions = array<i32: 1>} : vector<8x128xi32>
    %c0_3 = arith.constant 0 : index
    %c0_4 = arith.constant 0 : index
    %3 = vector.load %arg2[%c0_3, %c0_4] : memref<8x1xf32, #tpu.memory_space<vmem>>, vector<8x1xf32>
    %c0_5 = arith.constant 0 : index
    %c0_6 = arith.constant 0 : index
    %4 = vector.load %arg1[%c0_5, %c0_6] : memref<8x128xf32, #tpu.memory_space<vmem>>, vector<8x128xf32>
    %c0_7 = arith.constant 0 : index
    %c0_8 = arith.constant 0 : index
    %5 = vector.load %arg6[%c0_7, %c0_8] : memref<8x128xf32, #tpu.memory_space<vmem>>, vector<8x128xf32>
    tpu.vector_store %arg6[%c0_7, %c0_8], %4 {strides = array<i32>} : memref<8x128xf32, #tpu.memory_space<vmem>>, vector<8x128xf32>,
    %c0_i32 = arith.constant 0 : i32
    %6 = vector.broadcast %c0_i32 : i32 to vector<8x128xi32>
    %7 = arith.cmpi eq, %2, %6 : vector<8x128xi32>
    %cst = arith.constant 0.000000e+00 : f32
    %8 = vector.shape_cast %3 : vector<8x1xf32> to vector<8x1xf32>
    %9 = vector.broadcast %8 : vector<8x1xf32> to vector<8x128xf32>
    %10 = vector.broadcast %cst : f32 to vector<8x128xf32>
    %11 = arith.select %7, %9, %10 : vector<8x128xi1>, vector<8x128xf32>
    %c0_9 = arith.constant 0 : index
    %c0_10 = arith.constant 0 : index
    %12 = vector.load %arg5[%c0_9, %c0_10] : memref<8x128xf32, #tpu.memory_space<vmem>>, vector<8x128xf32>
    tpu.vector_store %arg5[%c0_9, %c0_10], %11 {strides = array<i32>} : memref<8x128xf32, #tpu.memory_space<vmem>>, vector<8x128xf32>,
    %13 = arith.cmpf ogt, %3, %0 : vector<8x1xf32>
    %14 = arith.extui %13 : vector<8x1xi1> to vector<8x1xi32>
    %15 = vector.shape_cast %14 : vector<8x1xi32> to vector<1x8x1xi32>
    %cst_11 = arith.constant dense<-2147483648> : vector<1xi32>
    %16 = vector.multi_reduction <maxsi>, %15, %cst_11 [1, 2] : vector<1x8x1xi32> to vector<1xi32>
    %17 = vector.shape_cast %16 : vector<1xi32> to vector<1x1x1xi32>
    %18 = vector.extract %17[0, 0, 0] : i32 from vector<1x1x1xi32>
    %c0_12 = arith.constant 0 : index
    %19 = memref.load %arg7[%c0_12] : memref<1xi32, #tpu.memory_space<smem>>
    memref.store %18, %arg7[%c0_12] : memref<1xi32, #tpu.memory_space<smem>>
    %c0_i32_13 = arith.constant 0 : i32
    %c12_i32 = arith.constant 12 : i32
    %20 = arith.addi %c0_i32_13, %c12_i32 : i32
    %c1_i32 = arith.constant 1 : i32
    scf.for %arg8 = %c0_i32_13 to %20 step %c1_i32  : i32 {
      %c0_15 = arith.constant 0 : index
      %21 = memref.load %arg7[%c0_15] : memref<1xi32, #tpu.memory_space<smem>>
      %c0_i32_16 = arith.constant 0 : i32
      %22 = arith.cmpi ne, %21, %c0_i32_16 : i32
      %23 = arith.extui %22 : i1 to i32
      %c0_i32_17 = arith.constant 0 : i32
      %24 = arith.cmpi ne, %23, %c0_i32_17 : i32
      scf.if %24 {
        %c0_18 = arith.constant 0 : index
        %c0_19 = arith.constant 0 : index
        %25 = vector.load %arg6[%c0_18, %c0_19] : memref<8x128xf32, #tpu.memory_space<vmem>>, vector<8x128xf32>
        %c0_20 = arith.constant 0 : index
        %c0_21 = arith.constant 0 : index
        %26 = vector.load %arg0[%c0_20, %c0_21] : memref<128x128xf32, #tpu.memory_space<vmem>>, vector<128x128xf32>
        %cst_22 = arith.constant dense<0.000000e+00> : vector<8x128xf32>
        %27 = tpu.matmul %25, %26, %cst_22 {dimension_numbers = #tpu.dot_dimension_numbers<[1], [0], [0], [1], [0, 0, 1, 1], [], []>, precision = #tpu.contract_precision<fp32>} : vector<8x128xf32>, vector<128x128xf32>, vector<8x128xf32> -> vector<8x128xf32>
        %c0_23 = arith.constant 0 : index
        %c0_24 = arith.constant 0 : index
        %28 = vector.load %arg6[%c0_23, %c0_24] : memref<8x128xf32, #tpu.memory_space<vmem>>, vector<8x128xf32>
        tpu.vector_store %arg6[%c0_23, %c0_24], %27 {strides = array<i32>} : memref<8x128xf32, #tpu.memory_space<vmem>>, vector<8x128xf32>,
        %29 = arith.mulf %27, %27 : vector<8x128xf32>
        %cst_25 = arith.constant dense<0.000000e+00> : vector<8xf32>
        %30 = vector.multi_reduction <add>, %29, %cst_25 [1] : vector<8x128xf32> to vector<8xf32>
        %31 = vector.shape_cast %30 : vector<8xf32> to vector<8x1xf32>
        %32 = math.sqrt %31 : vector<8x1xf32>
        %33 = arith.mulf %32, %1 : vector<8x1xf32>
        %c1_i32_26 = arith.constant 1 : i32
        %34 = arith.addi %arg8, %c1_i32_26 : i32
        %35 = vector.broadcast %34 : i32 to vector<8x128xi32>
        %36 = arith.cmpi eq, %2, %35 : vector<8x128xi32>
        %c0_27 = arith.constant 0 : index
        %c0_28 = arith.constant 0 : index
        %37 = vector.load %arg5[%c0_27, %c0_28] : memref<8x128xf32, #tpu.memory_space<vmem>>, vector<8x128xf32>
        %38 = vector.shape_cast %33 : vector<8x1xf32> to vector<8x1xf32>
        %39 = vector.broadcast %38 : vector<8x1xf32> to vector<8x128xf32>
        %40 = arith.select %36, %39, %37 : vector<8x128xi1>, vector<8x128xf32>
        %c0_29 = arith.constant 0 : index
        %c0_30 = arith.constant 0 : index
        %41 = vector.load %arg5[%c0_29, %c0_30] : memref<8x128xf32, #tpu.memory_space<vmem>>, vector<8x128xf32>
        tpu.vector_store %arg5[%c0_29, %c0_30], %40 {strides = array<i32>} : memref<8x128xf32, #tpu.memory_space<vmem>>, vector<8x128xf32>,
        %42 = arith.cmpf ogt, %33, %0 : vector<8x1xf32>
        %43 = arith.extui %42 : vector<8x1xi1> to vector<8x1xi32>
        %44 = vector.shape_cast %43 : vector<8x1xi32> to vector<1x8x1xi32>
        %cst_31 = arith.constant dense<-2147483648> : vector<1xi32>
        %45 = vector.multi_reduction <maxsi>, %44, %cst_31 [1, 2] : vector<1x8x1xi32> to vector<1xi32>
        %46 = vector.shape_cast %45 : vector<1xi32> to vector<1x1x1xi32>
        %47 = vector.extract %46[0, 0, 0] : i32 from vector<1x1x1xi32>
        %c0_32 = arith.constant 0 : index
        %48 = memref.load %arg7[%c0_32] : memref<1xi32, #tpu.memory_space<smem>>
        memref.store %47, %arg7[%c0_32] : memref<1xi32, #tpu.memory_space<smem>>
      } else {
      }
    }
    %c12_i32_14 = arith.constant 12 : i32
    return
  }
}

module attributes {stable_mosaic.version = 11 : i64} {
  func.func @_jacobi_kernel(%arg0: memref<128x128xf32, #tpu.memory_space<vmem>>, %arg1: memref<8x128xf32, #tpu.memory_space<vmem>>, %arg2: memref<8x1xf32, #tpu.memory_space<vmem>>, %arg3: memref<8x1xf32, #tpu.memory_space<vmem>>, %arg4: memref<8x1xf32, #tpu.memory_space<vmem>>, %arg5: memref<8x128xf32, #tpu.memory_space<vmem>>, %arg6: memref<8x128xf32, #tpu.memory_space<vmem>>, %arg7: memref<1x1xf32, #tpu.memory_space<vmem>>) attributes {dimension_semantics = [], scalar_prefetch = 0 : i64, scratch_operands = 2 : i64, tpu.core_type = #tpu.core_type<tc>} {
    %c0 = arith.constant 0 : index
    %c0_0 = arith.constant 0 : index
    %0 = vector.load %arg3[%c0, %c0_0] : memref<8x1xf32, #tpu.memory_space<vmem>>, vector<8x1xf32>
    %c0_1 = arith.constant 0 : index
    %c0_2 = arith.constant 0 : index
    %1 = vector.load %arg4[%c0_1, %c0_2] : memref<8x1xf32, #tpu.memory_space<vmem>>, vector<8x1xf32>
    %2 = tpu.iota {dimensions = array<i32: 1>} : vector<8x128xi32>
    %c0_3 = arith.constant 0 : index
    %c0_4 = arith.constant 0 : index
    %3 = vector.load %arg2[%c0_3, %c0_4] : memref<8x1xf32, #tpu.memory_space<vmem>>, vector<8x1xf32>
    %c0_5 = arith.constant 0 : index
    %c0_6 = arith.constant 0 : index
    %4 = vector.load %arg1[%c0_5, %c0_6] : memref<8x128xf32, #tpu.memory_space<vmem>>, vector<8x128xf32>
    %c0_7 = arith.constant 0 : index
    %c0_8 = arith.constant 0 : index
    %5 = vector.load %arg6[%c0_7, %c0_8] : memref<8x128xf32, #tpu.memory_space<vmem>>, vector<8x128xf32>
    tpu.vector_store %arg6[%c0_7, %c0_8], %4 {strides = array<i32>} : memref<8x128xf32, #tpu.memory_space<vmem>>, vector<8x128xf32>,
    %c0_i32 = arith.constant 0 : i32
    %6 = vector.broadcast %c0_i32 : i32 to vector<8x128xi32>
    %7 = arith.cmpi eq, %2, %6 : vector<8x128xi32>
    %cst = arith.constant 0.000000e+00 : f32
    %8 = vector.shape_cast %3 : vector<8x1xf32> to vector<8x1xf32>
    %9 = vector.broadcast %8 : vector<8x1xf32> to vector<8x128xf32>
    %10 = vector.broadcast %cst : f32 to vector<8x128xf32>
    %11 = arith.select %7, %9, %10 : vector<8x128xi1>, vector<8x128xf32>
    %c0_9 = arith.constant 0 : index
    %c0_10 = arith.constant 0 : index
    %12 = vector.load %arg5[%c0_9, %c0_10] : memref<8x128xf32, #tpu.memory_space<vmem>>, vector<8x128xf32>
    tpu.vector_store %arg5[%c0_9, %c0_10], %11 {strides = array<i32>} : memref<8x128xf32, #tpu.memory_space<vmem>>, vector<8x128xf32>,
    %13 = arith.cmpf ogt, %3, %0 : vector<8x1xf32>
    %14 = arith.extui %13 : vector<8x1xi1> to vector<8x1xi32>
    %15 = arith.sitofp %14 : vector<8x1xi32> to vector<8x1xf32>
    %cst_11 = arith.constant dense<0xFF800000> : vector<1xf32>
    %16 = vector.multi_reduction <maximumf>, %15, %cst_11 [0] : vector<8x1xf32> to vector<1xf32>
    %17 = vector.shape_cast %16 : vector<1xf32> to vector<1x1xf32>
    %c0_12 = arith.constant 0 : index
    %c0_13 = arith.constant 0 : index
    %18 = vector.load %arg7[%c0_12, %c0_13] : memref<1x1xf32, #tpu.memory_space<vmem>>, vector<1x1xf32>
    tpu.vector_store %arg7[%c0_12, %c0_13], %17 {strides = array<i32>} : memref<1x1xf32, #tpu.memory_space<vmem>>, vector<1x1xf32>,
    %c0_i32_14 = arith.constant 0 : i32
    %c12_i32 = arith.constant 12 : i32
    %19 = arith.addi %c0_i32_14, %c12_i32 : i32
    %c1_i32 = arith.constant 1 : i32
    scf.for %arg8 = %c0_i32_14 to %19 step %c1_i32  : i32 {
      %c0_16 = arith.constant 0 : index
      %c0_17 = arith.constant 0 : index
      %20 = vector.load %arg7[%c0_16, %c0_17] : memref<1x1xf32, #tpu.memory_space<vmem>>, vector<1x1xf32>
      %c0_18 = arith.constant 0 : index
      %c0_19 = arith.constant 0 : index
      %21 = vector.load %arg6[%c0_18, %c0_19] : memref<8x128xf32, #tpu.memory_space<vmem>>, vector<8x128xf32>
      %c0_20 = arith.constant 0 : index
      %c0_21 = arith.constant 0 : index
      %22 = vector.load %arg0[%c0_20, %c0_21] : memref<128x128xf32, #tpu.memory_space<vmem>>, vector<128x128xf32>
      %cst_22 = arith.constant dense<0.000000e+00> : vector<8x128xf32>
      %23 = tpu.matmul %21, %22, %cst_22 {dimension_numbers = #tpu.dot_dimension_numbers<[1], [0], [0], [1], [0, 0, 1, 1], [], []>, precision = #tpu.contract_precision<fp32>} : vector<8x128xf32>, vector<128x128xf32>, vector<8x128xf32> -> vector<8x128xf32>
      %c0_23 = arith.constant 0 : index
      %c0_24 = arith.constant 0 : index
      %24 = vector.load %arg6[%c0_23, %c0_24] : memref<8x128xf32, #tpu.memory_space<vmem>>, vector<8x128xf32>
      tpu.vector_store %arg6[%c0_23, %c0_24], %23 {strides = array<i32>} : memref<8x128xf32, #tpu.memory_space<vmem>>, vector<8x128xf32>,
      %25 = arith.mulf %23, %23 : vector<8x128xf32>
      %cst_25 = arith.constant dense<0.000000e+00> : vector<8xf32>
      %26 = vector.multi_reduction <add>, %25, %cst_25 [1] : vector<8x128xf32> to vector<8xf32>
      %27 = vector.shape_cast %26 : vector<8xf32> to vector<8x1xf32>
      %28 = math.sqrt %27 : vector<8x1xf32>
      %29 = arith.mulf %28, %1 : vector<8x1xf32>
      %c1_i32_26 = arith.constant 1 : i32
      %30 = arith.addi %arg8, %c1_i32_26 : i32
      %31 = vector.broadcast %30 : i32 to vector<8x128xi32>
      %32 = arith.cmpi eq, %2, %31 : vector<8x128xi32>
      %cst_27 = arith.constant 5.000000e-01 : f32
      %33 = vector.broadcast %cst_27 : f32 to vector<1x1xf32>
      %34 = arith.cmpf ogt, %20, %33 : vector<1x1xf32>
      %35 = vector.broadcast %34 : vector<1x1xi1> to vector<8x128xi1>
      %36 = arith.andi %32, %35 : vector<8x128xi1>
      %c0_28 = arith.constant 0 : index
      %c0_29 = arith.constant 0 : index
      %37 = vector.load %arg5[%c0_28, %c0_29] : memref<8x128xf32, #tpu.memory_space<vmem>>, vector<8x128xf32>
      %38 = vector.shape_cast %29 : vector<8x1xf32> to vector<8x1xf32>
      %39 = vector.broadcast %38 : vector<8x1xf32> to vector<8x128xf32>
      %40 = arith.select %36, %39, %37 : vector<8x128xi1>, vector<8x128xf32>
      %c0_30 = arith.constant 0 : index
      %c0_31 = arith.constant 0 : index
      %41 = vector.load %arg5[%c0_30, %c0_31] : memref<8x128xf32, #tpu.memory_space<vmem>>, vector<8x128xf32>
      tpu.vector_store %arg5[%c0_30, %c0_31], %40 {strides = array<i32>} : memref<8x128xf32, #tpu.memory_space<vmem>>, vector<8x128xf32>,
      %42 = arith.cmpf ogt, %29, %0 : vector<8x1xf32>
      %43 = arith.extui %42 : vector<8x1xi1> to vector<8x1xi32>
      %44 = arith.sitofp %43 : vector<8x1xi32> to vector<8x1xf32>
      %cst_32 = arith.constant dense<0xFF800000> : vector<1xf32>
      %45 = vector.multi_reduction <maximumf>, %44, %cst_32 [0] : vector<8x1xf32> to vector<1xf32>
      %46 = vector.shape_cast %45 : vector<1xf32> to vector<1x1xf32>
      %47 = arith.mulf %20, %46 : vector<1x1xf32>
      %c0_33 = arith.constant 0 : index
      %c0_34 = arith.constant 0 : index
      %48 = vector.load %arg7[%c0_33, %c0_34] : memref<1x1xf32, #tpu.memory_space<vmem>>, vector<1x1xf32>
      tpu.vector_store %arg7[%c0_33, %c0_34], %47 {strides = array<i32>} : memref<1x1xf32, #tpu.memory_space<vmem>>, vector<1x1xf32>,
    }
    %c12_i32_15 = arith.constant 12 : i32
    return
  }
}

</mosaic_0001>

<llo_original>
// kernel: tpu_custom_call.1
$region0: #{tpu_custom_call.1}
  #allocation0 [shape = 'u32[]', space=smem, size = 0x4, offset = 0x4, fixed_abs, tag = 'smem constant byte address 0x4 - core index']
  #allocation1 [shape = 'u32[144,128]{1,0:T(1,128)}', space=vmem, size = 0x12000, scoped, tag = 'internal scratch']
  #allocation2 [shape = 'f32[8,128]{1,0:T(8,128)}', space=vmem, size = 0x1000, scoped, tag = 'scratch operand']
  #allocation3 [shape = 's32[1]{0:T(128)}', space=smem, size = 0x200, scoped, tag = 'scratch operand']
  %s0 = inlined_call_operand.hbm [shape: f32[128,128], index: 0, kind: input, shape index: {}]
  %s1 = inlined_call_operand.vmem [shape: f32[8,128], index: 1, kind: input, shape index: {}]
  %s2 = inlined_call_operand.vmem [shape: f32[8,1], index: 2, kind: input, shape index: {}]
  %s3 = inlined_call_operand.vmem [shape: f32[8,1], index: 3, kind: input, shape index: {}]
  %s4 = inlined_call_operand.vmem [shape: f32[8,1], index: 4, kind: input, shape index: {}]
  %s5 = inlined_call_operand.hbm [shape: f32[8,128], index: 5, kind: output, shape index: {}]
  %s6 = sld [smem:[#allocation0]]
  $region45: #{tpu_custom_call.1} parent=0
    _
  %s8 = ssub.s32 1, %s6
  %s9 = scalar_select 0, %s8, %s6
  $region1: #{tpu_custom_call.1} parent=0
    #allocation4 [shape = 'u8[65536]{0}', space=vmem, size = 0x10000, scoped, tag = 'input window, operand 0, single buffered']
    #allocation5 [shape = 's32[1]{0}', space=sflag, size = 0x4, scoped, tag = 'scoped memory for tpu_custom_call.1']
    #allocation6 [shape = 's32[1]{0}', space=sflag, size = 0x4, scoped, tag = 'scoped memory for tpu_custom_call.1']
    #allocation7 [shape = 'u8[4096]{0}', space=vmem, size = 0x1000, scoped, tag = 'output window, operand 0, single buffered']
    %10 = vsyncpa [#allocation5], 0
    %11 = vsyncpa [#allocation6], 0
    // Predicated region
    $region2: #{tpu_custom_call.1} parent=1 // pred_check
      _
    $region3: #{tpu_custom_call.1} parent=1 // pred_check_branch
      %13 = sbr.rel (0) target = $region5
    $region4: #{tpu_custom_call.1} parent=1 // pred_region
      %s15 = ssub.s32 2048, 2048
      %16 = vsyncadd [#allocation5], %s15
      %s17 = sshll.u32 [#allocation4], 4
      %s18 = int_to_ptr.vmem [resolvable:$true] %s17
      %23 = dma.hbm_to_vmem [thread:$0]  %s0, 2048, %s18, [#allocation5], 128, 128, 8
    $region5: #{tpu_custom_call.1} parent=1 // pred_fallthru
      _
    // Predicated region
    $region6: #{tpu_custom_call.1} parent=1 // pred_check
      _
    $region7: #{tpu_custom_call.1} parent=1 // pred_check_branch
      %25 = sbr.rel (0) target = $region9
    $region8: #{tpu_custom_call.1} parent=1 // pred_region
      _
    $region9: #{tpu_custom_call.1} parent=1 // pred_fallthru
      _
    // Predicated region
    $region10: #{tpu_custom_call.1} parent=1 // pred_check
      _
    $region11: #{tpu_custom_call.1} parent=1 // pred_check_branch
      %27 = sbr.rel (0) target = $region13
    $region12: #{tpu_custom_call.1} parent=1 // pred_region
      _
    $region13: #{tpu_custom_call.1} parent=1 // pred_fallthru
      _
    // Predicated region
    $region14: #{tpu_custom_call.1} parent=1 // pred_check
      _
    $region15: #{tpu_custom_call.1} parent=1 // pred_check_branch
      %29 = sbr.rel (0) target = $region17
    $region16: #{tpu_custom_call.1} parent=1 // pred_region
      _
    $region17: #{tpu_custom_call.1} parent=1 // pred_fallthru
      _
    // Predicated region
    $region18: #{tpu_custom_call.1} parent=1 // pred_check
      _
    $region19: #{tpu_custom_call.1} parent=1 // pred_check_branch
      %31 = sbr.rel (0) target = $region21
    $region20: #{tpu_custom_call.1} parent=1 // pred_region
      _
    $region21: #{tpu_custom_call.1} parent=1 // pred_fallthru
      _
    // Predicated region
    $region22: #{tpu_custom_call.1} parent=1 // pred_check
      _
    $region23: #{tpu_custom_call.1} parent=1 // pred_check_branch
      %33 = sbr.rel (0) target = $region25
    $region24: #{tpu_custom_call.1} parent=1 // pred_region
      %34 = dma.done [#allocation5], 2048
    $region25: #{tpu_custom_call.1} parent=1 // pred_fallthru
      _
    %v35 = vld [vmem:[%s3] sm:$0xff]
    %v36 = vld [vmem:[%s4] sm:$0xff]
    %v37 = vlaneseq
    %v38 = vand.u32 %v37, 127
    %v39 = vld [vmem:[%s2] sm:$0xff]
    %v40 = vld [vmem:[%s1] sm:$0xff]
    %41 = vst [vmem:[#allocation2] sm:$0xff] %v40
    %vm42 = vcmp.eq.s32.totalorder %v38, 0
    %44 = vset.pattern.permute.xlu0 0
    %45 = vperm.xlu0 %44, %v39
    %v46 = vpop.permute.xlu0 %45
    %v48 = vsel %vm42, %v46, 0.0
    %49 = vst [vmem:[#allocation7] sm:$0xff] %v48
    %vm50 = vcmp.gt.f32.partialorder %v39, %v35
    %v51 = vsel %vm50, 1, 0
    %vm52 = vcmask 7168
    %v53 = vsel %vm52, %v51, 2147483648
    %v54 = vand.u32 %v53, 65535
    %v55 = vshra.s32 %v53, 16
    %v56 = vcvt.s32.f32 %v54
    %v57 = vcvt.s32.f32 %v55
    %58 = vmax.xlane.f32.xlu0 %v57
    %v59 = vpop.xlane.xlu0 %58
    %vm60 = vcmp.eq.f32.partialorder %v57, %v59
    %v61 = vsel %vm60, %v56, -inf
    %62 = vmax.xlane.f32.xlu0 %v61
    %v63 = vpop.xlane.xlu0 %62
    %v64 = vcvt.f32.s32 %v63
    %v65 = vcvt.f32.s32 %v59
    %v66 = vshll.u32 %v65, 16
    %v67 = vadd.s32 %v66, %v64
    %v68 = vrot.slane %v67, 4
    %vm69 = vcmp.gt.s32.totalorder %v67, %v68
    %v70 = vsel %vm69, %v67, %v68
    %v71 = vrot.slane %v70, 2
    %vm72 = vcmp.gt.s32.totalorder %v70, %v71
    %v73 = vsel %vm72, %v70, %v71
    %v74 = vrot.slane %v73, 1
    %vm75 = vcmp.gt.s32.totalorder %v73, %v74
    %v76 = vsel %vm75, %v73, %v74
    %s77 = vtos %v76
    %s78 = scalar_lea.smem [#allocation3], 0
    %79 = sst [smem:[%s78]] %s77
    loop: start=0, step=1, limit=12
    $region26: #{tpu_custom_call.1} parent=1 // loop_pre_header
      _
    $region27: #{tpu_custom_call.1} parent=1 // loop_header
      %s81 = sphi 0, %s85
      %p82 = scmp.ge.s32.totalorder %s81, 12
    $region28: #{tpu_custom_call.1} parent=1 // loop_header_branch
      %84 = sbr.rel (%p82) target = $region32
    $region29: #{tpu_custom_call.1} parent=1 // loop_body
      %s86 = sld [smem:[#allocation3]]
      %p87 = scmp.ne.s32.totalorder %s86, 0
      // Predicated region
      $region33: #{tpu_custom_call.1} parent=29 // pred_check
        %p88 = pneg %p87
      $region34: #{tpu_custom_call.1} parent=29 // pred_check_branch
        %90 = sbr.rel (%p88) target = $region36
      $region35: #{tpu_custom_call.1} parent=29 // pred_region
        %v91 = vld [vmem:[#allocation2] sm:$0xff]
        %v92 = vld [vmem:[#allocation4] sm:$0xff]
        %v93 = vld [vmem:[#allocation4 + $0x8] sm:$0xff]
        %v94 = vld [vmem:[#allocation4 + $0x10] sm:$0xff]
        %v95 = vld [vmem:[#allocation4 + $0x18] sm:$0xff]
        %v96 = vld [vmem:[#allocation4 + $0x20] sm:$0xff]
        %v97 = vld [vmem:[#allocation4 + $0x28] sm:$0xff]
        %v98 = vld [vmem:[#allocation4 + $0x30] sm:$0xff]
        %v99 = vld [vmem:[#allocation4 + $0x38] sm:$0xff]
        %v100 = vld [vmem:[#allocation4 + $0x40] sm:$0xff]
        %v101 = vld [vmem:[#allocation4 + $0x48] sm:$0xff]
        %v102 = vld [vmem:[#allocation4 + $0x50] sm:$0xff]
        %v103 = vld [vmem:[#allocation4 + $0x58] sm:$0xff]
        %v104 = vld [vmem:[#allocation4 + $0x60] sm:$0xff]
        %v105 = vld [vmem:[#allocation4 + $0x68] sm:$0xff]
        %v106 = vld [vmem:[#allocation4 + $0x70] sm:$0xff]
        %v107 = vld [vmem:[#allocation4 + $0x78] sm:$0xff]
        %108 = vmatprep.subr.mxu0 0.0
        %v109 = vand.u32 %v107, 4294901760
        %110 = vmatpush1.msra.mxu0 %v109
        %111 = vmatprep.subr.mxu0 0.0
        %v112 = vand.u32 %v106, 4294901760
        %113 = vmatpush1.msra.mxu0 %v112
        %114 = vmatprep.subr.mxu0 0.0
        %v115 = vand.u32 %v105, 4294901760
        %116 = vmatpush1.msra.mxu0 %v115
        %117 = vmatprep.subr.mxu0 0.0
        %v118 = vand.u32 %v104, 4294901760
        %119 = vmatpush1.msra.mxu0 %v118
        %120 = vmatprep.subr.mxu0 0.0
        %v121 = vand.u32 %v103, 4294901760
        %122 = vmatpush1.msra.mxu0 %v121
        %123 = vmatprep.subr.mxu0 0.0
        %v124 = vand.u32 %v102, 4294901760
        %125 = vmatpush1.msra.mxu0 %v124
        %126 = vmatprep.subr.mxu0 0.0
        %v127 = vand.u32 %v101, 4294901760
        %128 = vmatpush1.msra.mxu0 %v127
        %129 = vmatprep.subr.mxu0 0.0
        %v130 = vand.u32 %v100, 4294901760
        %131 = vmatpush1.msra.mxu0 %v130
        %132 = vmatprep.subr.mxu0 0.0
        %v133 = vand.u32 %v99, 4294901760
        %134 = vmatpush1.msra.mxu0 %v133
        %135 = vmatprep.subr.mxu0 0.0
        %v136 = vand.u32 %v98, 4294901760
        %137 = vmatpush1.msra.mxu0 %v136
        %138 = vmatprep.subr.mxu0 0.0
        %v139 = vand.u32 %v97, 4294901760
        %140 = vmatpush1.msra.mxu0 %v139
        %141 = vmatprep.subr.mxu0 0.0
        %v142 = vand.u32 %v96, 4294901760
        %143 = vmatpush1.msra.mxu0 %v142
        %144 = vmatprep.subr.mxu0 0.0
        %v145 = vand.u32 %v95, 4294901760
        %146 = vmatpush1.msra.mxu0 %v145
        %147 = vmatprep.subr.mxu0 0.0
        %v148 = vand.u32 %v94, 4294901760
        %149 = vmatpush1.msra.mxu0 %v148
        %150 = vmatprep.subr.mxu0 0.0
        %v151 = vand.u32 %v93, 4294901760
        %152 = vmatpush1.msra.mxu0 %v151
        %153 = vmatprep.subr.mxu0 0.0
        %v154 = vand.u32 %v92, 4294901760
        %155 = vmatpush1.msra.mxu0 %v154
        %156 = vmatprep.subr.mxu0 0.0
        %157 = vmatpush2.msra.mxu0 0.0
        %158 = vmatprep.subr.mxu0 0.0
        %159 = vmatpush2.msra.mxu0 0.0
        %160 = vmatprep.subr.mxu0 0.0
        %161 = vmatpush2.msra.mxu0 0.0
        %162 = vmatprep.subr.mxu0 0.0
        %163 = vmatpush2.msra.mxu0 0.0
        %164 = vmatprep.subr.mxu0 0.0
        %165 = vmatpush2.msra.mxu0 0.0
        %166 = vmatprep.subr.mxu0 0.0
        %167 = vmatpush2.msra.mxu0 0.0
        %168 = vmatprep.subr.mxu0 0.0
        %169 = vmatpush2.msra.mxu0 0.0
        %170 = vmatprep.subr.mxu0 0.0
        %171 = vmatpush2.msra.mxu0 0.0
        %172 = vmatprep.subr.mxu0 0.0
        %173 = vmatpush2.msra.mxu0 0.0
        %174 = vmatprep.subr.mxu0 0.0
        %175 = vmatpush2.msra.mxu0 0.0
        %176 = vmatprep.subr.mxu0 0.0
        %177 = vmatpush2.msra.mxu0 0.0
        %178 = vmatprep.subr.mxu0 0.0
        %179 = vmatpush2.msra.mxu0 0.0
        %180 = vmatprep.subr.mxu0 0.0
        %181 = vmatpush2.msra.mxu0 0.0
        %182 = vmatprep.subr.mxu0 0.0
        %183 = vmatpush2.msra.mxu0 0.0
        %184 = vmatprep.subr.mxu0 0.0
        %185 = vmatpush2.msra.mxu0 0.0
        %186 = vmatprep.subr.mxu0 0.0
        %187 = vmatpush2.msra.mxu0 0.0
        %188 = vmatprep.mubr.f32.mxu0 0.0
        %v189 = vand.u32 %v91, 4294901760
        %v190 = vsub.f32 %v91, %v189
        %v191 = vand.u32 %v190, 4294901760
        %v192 = vsub.f32 %v190, %v191
        %v193 = vand.u32 %v192, 4294901760
        %194 = vmatmul.mubr.f32.gmra.mxu0 %v193
        %v195 = vpop.f32.mrf.mxu0
        %v196 = vadd.f32 0.0, %v195
        %v197 = vpop.f32.mrf.mxu0
        %198 = vdwg.mxu0
        %199 = vmatprep.subr.mxu0 0.0
        %v200 = vand.u32 %v107, 4294901760
        %v201 = vsub.f32 %v107, %v200
        %v202 = vand.u32 %v201, 4294901760
        %v203 = vsub.f32 %v201, %v202
        %v204 = vand.u32 %v203, 4294901760
        %205 = vmatpush1.msra.mxu0 %v204
        %206 = vmatprep.subr.mxu0 0.0
        %v207 = vand.u32 %v106, 4294901760
        %v208 = vsub.f32 %v106, %v207
        %v209 = vand.u32 %v208, 4294901760
        %v210 = vsub.f32 %v208, %v209
        %v211 = vand.u32 %v210, 4294901760
        %212 = vmatpush1.msra.mxu0 %v211
        %213 = vmatprep.subr.mxu0 0.0
        %v214 = vand.u32 %v105, 4294901760
        %v215 = vsub.f32 %v105, %v214
        %v216 = vand.u32 %v215, 4294901760
        %v217 = vsub.f32 %v215, %v216
        %v218 = vand.u32 %v217, 4294901760
        %219 = vmatpush1.msra.mxu0 %v218
        %220 = vmatprep.subr.mxu0 0.0
        %v221 = vand.u32 %v104, 4294901760
        %v222 = vsub.f32 %v104, %v221
        %v223 = vand.u32 %v222, 4294901760
        %v224 = vsub.f32 %v222, %v223
        %v225 = vand.u32 %v224, 4294901760
        %226 = vmatpush1.msra.mxu0 %v225
        %227 = vmatprep.subr.mxu0 0.0
        %v228 = vand.u32 %v103, 4294901760
        %v229 = vsub.f32 %v103, %v228
        %v230 = vand.u32 %v229, 4294901760
        %v231 = vsub.f32 %v229, %v230
        %v232 = vand.u32 %v231, 4294901760
        %233 = vmatpush1.msra.mxu0 %v232
        %234 = vmatprep.subr.mxu0 0.0
        %v235 = vand.u32 %v102, 4294901760
        %v236 = vsub.f32 %v102, %v235
        %v237 = vand.u32 %v236, 4294901760
        %v238 = vsub.f32 %v236, %v237
        %v239 = vand.u32 %v238, 4294901760
        %240 = vmatpush1.msra.mxu0 %v239
        %241 = vmatprep.subr.mxu0 0.0
        %v242 = vand.u32 %v101, 4294901760
        %v243 = vsub.f32 %v101, %v242
        %v244 = vand.u32 %v243, 4294901760
        %v245 = vsub.f32 %v243, %v244
        %v246 = vand.u32 %v245, 4294901760
        %247 = vmatpush1.msra.mxu0 %v246
        %248 = vmatprep.subr.mxu0 0.0
        %v249 = vand.u32 %v100, 4294901760
        %v250 = vsub.f32 %v100, %v249
        %v251 = vand.u32 %v250, 4294901760
        %v252 = vsub.f32 %v250, %v251
        %v253 = vand.u32 %v252, 4294901760
        %254 = vmatpush1.msra.mxu0 %v253
        %255 = vmatprep.subr.mxu0 0.0
        %v256 = vand.u32 %v99, 4294901760
        %v257 = vsub.f32 %v99, %v256
        %v258 = vand.u32 %v257, 4294901760
        %v259 = vsub.f32 %v257, %v258
        %v260 = vand.u32 %v259, 4294901760
        %261 = vmatpush1.msra.mxu0 %v260
        %262 = vmatprep.subr.mxu0 0.0
        %v263 = vand.u32 %v98, 4294901760
        %v264 = vsub.f32 %v98, %v263
        %v265 = vand.u32 %v264, 4294901760
        %v266 = vsub.f32 %v264, %v265
        %v267 = vand.u32 %v266, 4294901760
        %268 = vmatpush1.msra.mxu0 %v267
        %269 = vmatprep.subr.mxu0 0.0
        %v270 = vand.u32 %v97, 4294901760
        %v271 = vsub.f32 %v97, %v270
        %v272 = vand.u32 %v271, 4294901760
        %v273 = vsub.f32 %v271, %v272
        %v274 = vand.u32 %v273, 4294901760
        %275 = vmatpush1.msra.mxu0 %v274
        %276 = vmatprep.subr.mxu0 0.0
        %v277 = vand.u32 %v96, 4294901760
        %v278 = vsub.f32 %v96, %v277
        %v279 = vand.u32 %v278, 4294901760
        %v280 = vsub.f32 %v278, %v279
        %v281 = vand.u32 %v280, 4294901760
        %282 = vmatpush1.msra.mxu0 %v281
        %283 = vmatprep.subr.mxu0 0.0
        %v284 = vand.u32 %v95, 4294901760
        %v285 = vsub.f32 %v95, %v284
        %v286 = vand.u32 %v285, 4294901760
        %v287 = vsub.f32 %v285, %v286
        %v288 = vand.u32 %v287, 4294901760
        %289 = vmatpush1.msra.mxu0 %v288
        %290 = vmatprep.subr.mxu0 0.0
        %v291 = vand.u32 %v94, 4294901760
        %v292 = vsub.f32 %v94, %v291
        %v293 = vand.u32 %v292, 4294901760
        %v294 = vsub.f32 %v292, %v293
        %v295 = vand.u32 %v294, 4294901760
        %296 = vmatpush1.msra.mxu0 %v295
        %297 = vmatprep.subr.mxu0 0.0
        %v298 = vand.u32 %v93, 4294901760
        %v299 = vsub.f32 %v93, %v298
        %v300 = vand.u32 %v299, 4294901760
        %v301 = vsub.f32 %v299, %v300
        %v302 = vand.u32 %v301, 4294901760
        %303 = vmatpush1.msra.mxu0 %v302
        %304 = vmatprep.subr.mxu0 0.0
        %v305 = vand.u32 %v92, 4294901760
        %v306 = vsub.f32 %v92, %v305
        %v307 = vand.u32 %v306, 4294901760
        %v308 = vsub.f32 %v306, %v307
        %v309 = vand.u32 %v308, 4294901760
        %310 = vmatpush1.msra.mxu0 %v309
        %311 = vmatprep.subr.mxu0 0.0
        %312 = vmatpush2.msra.mxu0 0.0
        %313 = vmatprep.subr.mxu0 0.0
        %314 = vmatpush2.msra.mxu0 0.0
        %315 = vmatprep.subr.mxu0 0.0
        %316 = vmatpush2.msra.mxu0 0.0
        %317 = vmatprep.subr.mxu0 0.0
        %318 = vmatpush2.msra.mxu0 0.0
        %319 = vmatprep.subr.mxu0 0.0
        %320 = vmatpush2.msra.mxu0 0.0
        %321 = vmatprep.subr.mxu0 0.0
        %322 = vmatpush2.msra.mxu0 0.0
        %323 = vmatprep.subr.mxu0 0.0
        %324 = vmatpush2.msra.mxu0 0.0
        %325 = vmatprep.subr.mxu0 0.0
        %326 = vmatpush2.msra.mxu0 0.0
        %327 = vmatprep.subr.mxu0 0.0
        %328 = vmatpush2.msra.mxu0 0.0
        %329 = vmatprep.subr.mxu0 0.0
        %330 = vmatpush2.msra.mxu0 0.0
        %331 = vmatprep.subr.mxu0 0.0
        %332 = vmatpush2.msra.mxu0 0.0
        %333 = vmatprep.subr.mxu0 0.0
        %334 = vmatpush2.msra.mxu0 0.0
        %335 = vmatprep.subr.mxu0 0.0
        %336 = vmatpush2.msra.mxu0 0.0
        %337 = vmatprep.subr.mxu0 0.0
        %338 = vmatpush2.msra.mxu0 0.0
        %339 = vmatprep.subr.mxu0 0.0
        %340 = vmatpush2.msra.mxu0 0.0
        %341 = vmatprep.subr.mxu0 0.0
        %342 = vmatpush2.msra.mxu0 0.0
        %343 = vmatprep.mubr.f32.mxu0 0.0
        %v344 = vand.u32 %v91, 4294901760
        %345 = vmatmul.mubr.f32.gmra.mxu0 %v344
        %v346 = vpop.f32.mrf.mxu0
        %v347 = vadd.f32 %v196, %v346
        %v348 = vpop.f32.mrf.mxu0
        %349 = vdwg.mxu0
        %350 = vmatprep.subr.mxu0 0.0
        %v351 = vand.u32 %v107, 4294901760
        %v352 = vsub.f32 %v107, %v351
        %353 = vmatpush1.msra.mxu0 %v352
        %354 = vmatprep.subr.mxu0 0.0
        %v355 = vand.u32 %v106, 4294901760
        %v356 = vsub.f32 %v106, %v355
        %357 = vmatpush1.msra.mxu0 %v356
        %358 = vmatprep.subr.mxu0 0.0
        %v359 = vand.u32 %v105, 4294901760
        %v360 = vsub.f32 %v105, %v359
        %361 = vmatpush1.msra.mxu0 %v360
        %362 = vmatprep.subr.mxu0 0.0
        %v363 = vand.u32 %v104, 4294901760
        %v364 = vsub.f32 %v104, %v363
        %365 = vmatpush1.msra.mxu0 %v364
        %366 = vmatprep.subr.mxu0 0.0
        %v367 = vand.u32 %v103, 4294901760
        %v368 = vsub.f32 %v103, %v367
        %369 = vmatpush1.msra.mxu0 %v368
        %370 = vmatprep.subr.mxu0 0.0
        %v371 = vand.u32 %v102, 4294901760
        %v372 = vsub.f32 %v102, %v371
        %373 = vmatpush1.msra.mxu0 %v372
        %374 = vmatprep.subr.mxu0 0.0
        %v375 = vand.u32 %v101, 4294901760
        %v376 = vsub.f32 %v101, %v375
        %377 = vmatpush1.msra.mxu0 %v376
        %378 = vmatprep.subr.mxu0 0.0
        %v379 = vand.u32 %v100, 4294901760
        %v380 = vsub.f32 %v100, %v379
        %381 = vmatpush1.msra.mxu0 %v380
        %382 = vmatprep.subr.mxu0 0.0
        %v383 = vand.u32 %v99, 4294901760
        %v384 = vsub.f32 %v99, %v383
        %385 = vmatpush1.msra.mxu0 %v384
        %386 = vmatprep.subr.mxu0 0.0
        %v387 = vand.u32 %v98, 4294901760
        %v388 = vsub.f32 %v98, %v387
        %389 = vmatpush1.msra.mxu0 %v388
        %390 = vmatprep.subr.mxu0 0.0
        %v391 = vand.u32 %v97, 4294901760
        %v392 = vsub.f32 %v97, %v391
        %393 = vmatpush1.msra.mxu0 %v392
        %394 = vmatprep.subr.mxu0 0.0
        %v395 = vand.u32 %v96, 4294901760
        %v396 = vsub.f32 %v96, %v395
        %397 = vmatpush1.msra.mxu0 %v396
        %398 = vmatprep.subr.mxu0 0.0
        %v399 = vand.u32 %v95, 4294901760
        %v400 = vsub.f32 %v95, %v399
        %401 = vmatpush1.msra.mxu0 %v400
        %402 = vmatprep.subr.mxu0 0.0
        %v403 = vand.u32 %v94, 4294901760
        %v404 = vsub.f32 %v94, %v403
        %405 = vmatpush1.msra.mxu0 %v404
        %406 = vmatprep.subr.mxu0 0.0
        %v407 = vand.u32 %v93, 4294901760
        %v408 = vsub.f32 %v93, %v407
        %409 = vmatpush1.msra.mxu0 %v408
        %410 = vmatprep.subr.mxu0 0.0
        %v411 = vand.u32 %v92, 4294901760
        %v412 = vsub.f32 %v92, %v411
        %413 = vmatpush1.msra.mxu0 %v412
        %414 = vmatprep.subr.mxu0 0.0
        %415 = vmatpush2.msra.mxu0 0.0
        %416 = vmatprep.subr.mxu0 0.0
        %417 = vmatpush2.msra.mxu0 0.0
        %418 = vmatprep.subr.mxu0 0.0
        %419 = vmatpush2.msra.mxu0 0.0
        %420 = vmatprep.subr.mxu0 0.0
        %421 = vmatpush2.msra.mxu0 0.0
        %422 = vmatprep.subr.mxu0 0.0
        %423 = vmatpush2.msra.mxu0 0.0
        %424 = vmatprep.subr.mxu0 0.0
        %425 = vmatpush2.msra.mxu0 0.0
        %426 = vmatprep.subr.mxu0 0.0
        %427 = vmatpush2.msra.mxu0 0.0
        %428 = vmatprep.subr.mxu0 0.0
        %429 = vmatpush2.msra.mxu0 0.0
        %430 = vmatprep.subr.mxu0 0.0
        %431 = vmatpush2.msra.mxu0 0.0
        %432 = vmatprep.subr.mxu0 0.0
        %433 = vmatpush2.msra.mxu0 0.0
        %434 = vmatprep.subr.mxu0 0.0
        %435 = vmatpush2.msra.mxu0 0.0
        %436 = vmatprep.subr.mxu0 0.0
        %437 = vmatpush2.msra.mxu0 0.0
        %438 = vmatprep.subr.mxu0 0.0
        %439 = vmatpush2.msra.mxu0 0.0
        %440 = vmatprep.subr.mxu0 0.0
        %441 = vmatpush2.msra.mxu0 0.0
        %442 = vmatprep.subr.mxu0 0.0
        %443 = vmatpush2.msra.mxu0 0.0
        %444 = vmatprep.subr.mxu0 0.0
        %445 = vmatpush2.msra.mxu0 0.0
        %446 = vmatprep.mubr.f32.mxu0 0.0
        %v447 = vand.u32 %v91, 4294901760
        %v448 = vsub.f32 %v91, %v447
        %449 = vmatmul.mubr.f32.gmra.mxu0 %v448
        %v450 = vpop.f32.mrf.mxu0
        %v451 = vadd.f32 %v347, %v450
        %v452 = vpop.f32.mrf.mxu0
        %453 = vdwg.mxu0
        %454 = vmatprep.subr.mxu0 0.0
        %v455 = vand.u32 %v107, 4294901760
        %456 = vmatpush1.msra.mxu0 %v455
        %457 = vmatprep.subr.mxu0 0.0
        %v458 = vand.u32 %v106, 4294901760
        %459 = vmatpush1.msra.mxu0 %v458
        %460 = vmatprep.subr.mxu0 0.0
        %v461 = vand.u32 %v105, 4294901760
        %462 = vmatpush1.msra.mxu0 %v461
        %463 = vmatprep.subr.mxu0 0.0
        %v464 = vand.u32 %v104, 4294901760
        %465 = vmatpush1.msra.mxu0 %v464
        %466 = vmatprep.subr.mxu0 0.0
        %v467 = vand.u32 %v103, 4294901760
        %468 = vmatpush1.msra.mxu0 %v467
        %469 = vmatprep.subr.mxu0 0.0
        %v470 = vand.u32 %v102, 4294901760
        %471 = vmatpush1.msra.mxu0 %v470
        %472 = vmatprep.subr.mxu0 0.0
        %v473 = vand.u32 %v101, 4294901760
        %474 = vmatpush1.msra.mxu0 %v473
        %475 = vmatprep.subr.mxu0 0.0
        %v476 = vand.u32 %v100, 4294901760
        %477 = vmatpush1.msra.mxu0 %v476
        %478 = vmatprep.subr.mxu0 0.0
        %v479 = vand.u32 %v99, 4294901760
        %480 = vmatpush1.msra.mxu0 %v479
        %481 = vmatprep.subr.mxu0 0.0
        %v482 = vand.u32 %v98, 4294901760
        %483 = vmatpush1.msra.mxu0 %v482
        %484 = vmatprep.subr.mxu0 0.0
        %v485 = vand.u32 %v97, 4294901760
        %486 = vmatpush1.msra.mxu0 %v485
        %487 = vmatprep.subr.mxu0 0.0
        %v488 = vand.u32 %v96, 4294901760
        %489 = vmatpush1.msra.mxu0 %v488
        %490 = vmatprep.subr.mxu0 0.0
        %v491 = vand.u32 %v95, 4294901760
        %492 = vmatpush1.msra.mxu0 %v491
        %493 = vmatprep.subr.mxu0 0.0
        %v494 = vand.u32 %v94, 4294901760
        %495 = vmatpush1.msra.mxu0 %v494
        %496 = vmatprep.subr.mxu0 0.0
        %v497 = vand.u32 %v93, 4294901760
        %498 = vmatpush1.msra.mxu0 %v497
        %499 = vmatprep.subr.mxu0 0.0
        %v500 = vand.u32 %v92, 4294901760
        %501 = vmatpush1.msra.mxu0 %v500
        %502 = vmatprep.subr.mxu0 0.0
        %503 = vmatpush2.msra.mxu0 0.0
        %504 = vmatprep.subr.mxu0 0.0
        %505 = vmatpush2.msra.mxu0 0.0
        %506 = vmatprep.subr.mxu0 0.0
        %507 = vmatpush2.msra.mxu0 0.0
        %508 = vmatprep.subr.mxu0 0.0
        %509 = vmatpush2.msra.mxu0 0.0
        %510 = vmatprep.subr.mxu0 0.0
        %511 = vmatpush2.msra.mxu0 0.0
        %512 = vmatprep.subr.mxu0 0.0
        %513 = vmatpush2.msra.mxu0 0.0
        %514 = vmatprep.subr.mxu0 0.0
        %515 = vmatpush2.msra.mxu0 0.0
        %516 = vmatprep.subr.mxu0 0.0
        %517 = vmatpush2.msra.mxu0 0.0
        %518 = vmatprep.subr.mxu0 0.0
        %519 = vmatpush2.msra.mxu0 0.0
        %520 = vmatprep.subr.mxu0 0.0
        %521 = vmatpush2.msra.mxu0 0.0
        %522 = vmatprep.subr.mxu0 0.0
        %523 = vmatpush2.msra.mxu0 0.0
        %524 = vmatprep.subr.mxu0 0.0
        %525 = vmatpush2.msra.mxu0 0.0
        %526 = vmatprep.subr.mxu0 0.0
        %527 = vmatpush2.msra.mxu0 0.0
        %528 = vmatprep.subr.mxu0 0.0
        %529 = vmatpush2.msra.mxu0 0.0
        %530 = vmatprep.subr.mxu0 0.0
        %531 = vmatpush2.msra.mxu0 0.0
        %532 = vmatprep.subr.mxu0 0.0
        %533 = vmatpush2.msra.mxu0 0.0
        %534 = vmatprep.mubr.f32.mxu0 0.0
        %v535 = vand.u32 %v91, 4294901760
        %v536 = vsub.f32 %v91, %v535
        %v537 = vand.u32 %v536, 4294901760
        %538 = vmatmul.mubr.f32.gmra.mxu0 %v537
        %v539 = vpop.f32.mrf.mxu0
        %v540 = vadd.f32 %v451, %v539
        %v541 = vpop.f32.mrf.mxu0
        %542 = vdwg.mxu0
        %543 = vmatprep.subr.mxu0 0.0
        %v544 = vand.u32 %v107, 4294901760
        %v545 = vsub.f32 %v107, %v544
        %v546 = vand.u32 %v545, 4294901760
        %547 = vmatpush1.msra.mxu0 %v546
        %548 = vmatprep.subr.mxu0 0.0
        %v549 = vand.u32 %v106, 4294901760
        %v550 = vsub.f32 %v106, %v549
        %v551 = vand.u32 %v550, 4294901760
        %552 = vmatpush1.msra.mxu0 %v551
        %553 = vmatprep.subr.mxu0 0.0
        %v554 = vand.u32 %v105, 4294901760
        %v555 = vsub.f32 %v105, %v554
        %v556 = vand.u32 %v555, 4294901760
        %557 = vmatpush1.msra.mxu0 %v556
        %558 = vmatprep.subr.mxu0 0.0
        %v559 = vand.u32 %v104, 4294901760
        %v560 = vsub.f32 %v104, %v559
        %v561 = vand.u32 %v560, 4294901760
        %562 = vmatpush1.msra.mxu0 %v561
        %563 = vmatprep.subr.mxu0 0.0
        %v564 = vand.u32 %v103, 4294901760
        %v565 = vsub.f32 %v103, %v564
        %v566 = vand.u32 %v565, 4294901760
        %567 = vmatpush1.msra.mxu0 %v566
        %568 = vmatprep.subr.mxu0 0.0
        %v569 = vand.u32 %v102, 4294901760
        %v570 = vsub.f32 %v102, %v569
        %v571 = vand.u32 %v570, 4294901760
        %572 = vmatpush1.msra.mxu0 %v571
        %573 = vmatprep.subr.mxu0 0.0
        %v574 = vand.u32 %v101, 4294901760
        %v575 = vsub.f32 %v101, %v574
        %v576 = vand.u32 %v575, 4294901760
        %577 = vmatpush1.msra.mxu0 %v576
        %578 = vmatprep.subr.mxu0 0.0
        %v579 = vand.u32 %v100, 4294901760
        %v580 = vsub.f32 %v100, %v579
        %v581 = vand.u32 %v580, 4294901760
        %582 = vmatpush1.msra.mxu0 %v581
        %583 = vmatprep.subr.mxu0 0.0
        %v584 = vand.u32 %v99, 4294901760
        %v585 = vsub.f32 %v99, %v584
        %v586 = vand.u32 %v585, 4294901760
        %587 = vmatpush1.msra.mxu0 %v586
        %588 = vmatprep.subr.mxu0 0.0
        %v589 = vand.u32 %v98, 4294901760
        %v590 = vsub.f32 %v98, %v589
        %v591 = vand.u32 %v590, 4294901760
        %592 = vmatpush1.msra.mxu0 %v591
        %593 = vmatprep.subr.mxu0 0.0
        %v594 = vand.u32 %v97, 4294901760
        %v595 = vsub.f32 %v97, %v594
        %v596 = vand.u32 %v595, 4294901760
        %597 = vmatpush1.msra.mxu0 %v596
        %598 = vmatprep.subr.mxu0 0.0
        %v599 = vand.u32 %v96, 4294901760
        %v600 = vsub.f32 %v96, %v599
        %v601 = vand.u32 %v600, 4294901760
        %602 = vmatpush1.msra.mxu0 %v601
        %603 = vmatprep.subr.mxu0 0.0
        %v604 = vand.u32 %v95, 4294901760
        %v605 = vsub.f32 %v95, %v604
        %v606 = vand.u32 %v605, 4294901760
        %607 = vmatpush1.msra.mxu0 %v606
        %608 = vmatprep.subr.mxu0 0.0
        %v609 = vand.u32 %v94, 4294901760
        %v610 = vsub.f32 %v94, %v609
        %v611 = vand.u32 %v610, 4294901760
        %612 = vmatpush1.msra.mxu0 %v611
        %613 = vmatprep.subr.mxu0 0.0
        %v614 = vand.u32 %v93, 4294901760
        %v615 = vsub.f32 %v93, %v614
        %v616 = vand.u32 %v615, 4294901760
        %617 = vmatpush1.msra.mxu0 %v616
        %618 = vmatprep.subr.mxu0 0.0
        %v619 = vand.u32 %v92, 4294901760
        %v620 = vsub.f32 %v92, %v619
        %v621 = vand.u32 %v620, 4294901760
        %622 = vmatpush1.msra.mxu0 %v621
        %623 = vmatprep.subr.mxu0 0.0
        %624 = vmatpush2.msra.mxu0 0.0
        %625 = vmatprep.subr.mxu0 0.0
        %626 = vmatpush2.msra.mxu0 0.0
        %627 = vmatprep.subr.mxu0 0.0
        %628 = vmatpush2.msra.mxu0 0.0
        %629 = vmatprep.subr.mxu0 0.0
        %630 = vmatpush2.msra.mxu0 0.0
        %631 = vmatprep.subr.mxu0 0.0
        %632 = vmatpush2.msra.mxu0 0.0
        %633 = vmatprep.subr.mxu0 0.0
        %634 = vmatpush2.msra.mxu0 0.0
        %635 = vmatprep.subr.mxu0 0.0
        %636 = vmatpush2.msra.mxu0 0.0
        %637 = vmatprep.subr.mxu0 0.0
        %638 = vmatpush2.msra.mxu0 0.0
        %639 = vmatprep.subr.mxu0 0.0
        %640 = vmatpush2.msra.mxu0 0.0
        %641 = vmatprep.subr.mxu0 0.0
        %642 = vmatpush2.msra.mxu0 0.0
        %643 = vmatprep.subr.mxu0 0.0
        %644 = vmatpush2.msra.mxu0 0.0
        %645 = vmatprep.subr.mxu0 0.0
        %646 = vmatpush2.msra.mxu0 0.0
        %647 = vmatprep.subr.mxu0 0.0
        %648 = vmatpush2.msra.mxu0 0.0
        %649 = vmatprep.subr.mxu0 0.0
        %650 = vmatpush2.msra.mxu0 0.0
        %651 = vmatprep.subr.mxu0 0.0
        %652 = vmatpush2.msra.mxu0 0.0
        %653 = vmatprep.subr.mxu0 0.0
        %654 = vmatpush2.msra.mxu0 0.0
        %655 = vmatprep.mubr.f32.mxu0 0.0
        %v656 = vand.u32 %v91, 4294901760
        %657 = vmatmul.mubr.f32.gmra.mxu0 %v656
        %v658 = vpop.f32.mrf.mxu0
        %v659 = vadd.f32 %v540, %v658
        %v660 = vpop.f32.mrf.mxu0
        %661 = vdwg.mxu0
        %662 = vmatprep.subr.mxu0 0.0
        %v663 = vand.u32 %v107, 4294901760
        %664 = vmatpush1.msra.mxu0 %v663
        %665 = vmatprep.subr.mxu0 0.0
        %v666 = vand.u32 %v106, 4294901760
        %667 = vmatpush1.msra.mxu0 %v666
        %668 = vmatprep.subr.mxu0 0.0
        %v669 = vand.u32 %v105, 4294901760
        %670 = vmatpush1.msra.mxu0 %v669
        %671 = vmatprep.subr.mxu0 0.0
        %v672 = vand.u32 %v104, 4294901760
        %673 = vmatpush1.msra.mxu0 %v672
        %674 = vmatprep.subr.mxu0 0.0
        %v675 = vand.u32 %v103, 4294901760
        %676 = vmatpush1.msra.mxu0 %v675
        %677 = vmatprep.subr.mxu0 0.0
        %v678 = vand.u32 %v102, 4294901760
        %679 = vmatpush1.msra.mxu0 %v678
        %680 = vmatprep.subr.mxu0 0.0
        %v681 = vand.u32 %v101, 4294901760
        %682 = vmatpush1.msra.mxu0 %v681
        %683 = vmatprep.subr.mxu0 0.0
        %v684 = vand.u32 %v100, 4294901760
        %685 = vmatpush1.msra.mxu0 %v684
        %686 = vmatprep.subr.mxu0 0.0
        %v687 = vand.u32 %v99, 4294901760
        %688 = vmatpush1.msra.mxu0 %v687
        %689 = vmatprep.subr.mxu0 0.0
        %v690 = vand.u32 %v98, 4294901760
        %691 = vmatpush1.msra.mxu0 %v690
        %692 = vmatprep.subr.mxu0 0.0
        %v693 = vand.u32 %v97, 4294901760
        %694 = vmatpush1.msra.mxu0 %v693
        %695 = vmatprep.subr.mxu0 0.0
        %v696 = vand.u32 %v96, 4294901760
        %697 = vmatpush1.msra.mxu0 %v696
        %698 = vmatprep.subr.mxu0 0.0
        %v699 = vand.u32 %v95, 4294901760
        %700 = vmatpush1.msra.mxu0 %v699
        %701 = vmatprep.subr.mxu0 0.0
        %v702 = vand.u32 %v94, 4294901760
        %703 = vmatpush1.msra.mxu0 %v702
        %704 = vmatprep.subr.mxu0 0.0
        %v705 = vand.u32 %v93, 4294901760
        %706 = vmatpush1.msra.mxu0 %v705
        %707 = vmatprep.subr.mxu0 0.0
        %v708 = vand.u32 %v92, 4294901760
        %709 = vmatpush1.msra.mxu0 %v708
        %710 = vmatprep.subr.mxu0 0.0
        %711 = vmatpush2.msra.mxu0 0.0
        %712 = vmatprep.subr.mxu0 0.0
        %713 = vmatpush2.msra.mxu0 0.0
        %714 = vmatprep.subr.mxu0 0.0
        %715 = vmatpush2.msra.mxu0 0.0
        %716 = vmatprep.subr.mxu0 0.0
        %717 = vmatpush2.msra.mxu0 0.0
        %718 = vmatprep.subr.mxu0 0.0
        %719 = vmatpush2.msra.mxu0 0.0
        %720 = vmatprep.subr.mxu0 0.0
        %721 = vmatpush2.msra.mxu0 0.0
        %722 = vmatprep.subr.mxu0 0.0
        %723 = vmatpush2.msra.mxu0 0.0
        %724 = vmatprep.subr.mxu0 0.0
        %725 = vmatpush2.msra.mxu0 0.0
        %726 = vmatprep.subr.mxu0 0.0
        %727 = vmatpush2.msra.mxu0 0.0
        %728 = vmatprep.subr.mxu0 0.0
        %729 = vmatpush2.msra.mxu0 0.0
        %730 = vmatprep.subr.mxu0 0.0
        %731 = vmatpush2.msra.mxu0 0.0
        %732 = vmatprep.subr.mxu0 0.0
        %733 = vmatpush2.msra.mxu0 0.0
        %734 = vmatprep.subr.mxu0 0.0
        %735 = vmatpush2.msra.mxu0 0.0
        %736 = vmatprep.subr.mxu0 0.0
        %737 = vmatpush2.msra.mxu0 0.0
        %738 = vmatprep.subr.mxu0 0.0
        %739 = vmatpush2.msra.mxu0 0.0
        %740 = vmatprep.subr.mxu0 0.0
        %741 = vmatpush2.msra.mxu0 0.0
        %742 = vmatprep.mubr.f32.mxu0 0.0
        %v743 = vand.u32 %v91, 4294901760
        %744 = vmatmul.mubr.f32.gmra.mxu0 %v743
        %v745 = vpop.f32.mrf.mxu0
        %v746 = vadd.f32 %v659, %v745
        %v747 = vpop.f32.mrf.mxu0
        %748 = vdwg.mxu0
        %749 = vst [vmem:[#allocation2] sm:$0xff] %v746
        %v750 = vmul.f32 %v746, %v746
        %751 = vadd.xlane.f32.xlu0 %v750
        %v752 = vpop.xlane.xlu0 %751
        %v753 = vrsqrt.pop %v752
        %v754 = vmul.f32 %v752, %v753
        %vm755 = vcmp.eq.f32.partialorder %v752, inf
        %v756 = vsel %vm755, %v752, %v754
        %vm757 = vcmp.eq.f32.partialorder %v752, 0.0
        %v758 = vand.u32 %v752, 2147483648
        %v759 = vsel %vm757, %v758, %v756
        %v760 = vmul.f32 %v759, %v36
        %s761 = sadd.s32 %s81, 1
        %v762 = vstv %s761
        %vm763 = vcmp.eq.s32.totalorder %v38, %v762
        %v764 = vld [vmem:[#allocation7] sm:$0xff]
        %766 = vset.pattern.permute.xlu0 0
        %767 = vperm.xlu0 %766, %v760
        %v768 = vpop.permute.xlu0 %767
        %v770 = vsel %vm763, %v768, %v764
        %771 = vst [vmem:[#allocation7] sm:$0xff] %v770
        %vm772 = vcmp.gt.f32.partialorder %v760, %v35
        %v773 = vsel %vm772, 1, 0
        %v774 = vsel %vm52, %v773, 2147483648
        %v775 = vand.u32 %v774, 65535
        %v776 = vshra.s32 %v774, 16
        %v777 = vcvt.s32.f32 %v775
        %v778 = vcvt.s32.f32 %v776
        %779 = vmax.xlane.f32.xlu0 %v778
        %v780 = vpop.xlane.xlu0 %779
        %vm781 = vcmp.eq.f32.partialorder %v778, %v780
        %v782 = vsel %vm781, %v777, -inf
        %783 = vmax.xlane.f32.xlu0 %v782
        %v784 = vpop.xlane.xlu0 %783
        %v785 = vcvt.f32.s32 %v784
        %v786 = vcvt.f32.s32 %v780
        %v787 = vshll.u32 %v786, 16
        %v788 = vadd.s32 %v787, %v785
        %v789 = vrot.slane %v788, 4
        %vm790 = vcmp.gt.s32.totalorder %v788, %v789
        %v791 = vsel %vm790, %v788, %v789
        %v792 = vrot.slane %v791, 2
        %vm793 = vcmp.gt.s32.totalorder %v791, %v792
        %v794 = vsel %vm793, %v791, %v792
        %v795 = vrot.slane %v794, 1
        %vm796 = vcmp.gt.s32.totalorder %v794, %v795
        %v797 = vsel %vm796, %v794, %v795
        %s798 = vtos %v797
        %799 = sst [smem:[%s78]] %s798
      $region36: #{tpu_custom_call.1} parent=29 // pred_fallthru
        _
    $region30: #{tpu_custom_call.1} parent=1 // loop_footer
      %s85 = sadd.s32 1, %s81
    $region31: #{tpu_custom_call.1} parent=1 // loop_footer_branch
      %80 = sbr.rel target = $region27
    $region32: #{tpu_custom_call.1} parent=1 // loop_exit
      _
    // Predicated region
    $region37: #{tpu_custom_call.1} parent=1 // pred_check
      _
    $region38: #{tpu_custom_call.1} parent=1 // pred_check_branch
      %801 = sbr.rel (0) target = $region40
    $region39: #{tpu_custom_call.1} parent=1 // pred_region
      %s803 = ssub.s32 128, 128
      %804 = vsyncadd [#allocation6], %s803
      %s806 = sshll.u32 [#allocation7], 4
      %s807 = int_to_ptr.vmem [resolvable:$true] %s806
      %809 = dma.vmem_to_hbm [thread:$0]  %s807, 128, %s5, [#allocation6]
    $region40: #{tpu_custom_call.1} parent=1 // pred_fallthru
      _
    // Predicated region
    $region41: #{tpu_custom_call.1} parent=1 // pred_check
      _
    $region42: #{tpu_custom_call.1} parent=1 // pred_check_branch
      %811 = sbr.rel (0) target = $region44
    $region43: #{tpu_custom_call.1} parent=1 // pred_region
      %812 = dma.done [#allocation6], 128
    $region44: #{tpu_custom_call.1} parent=1 // pred_fallthru
      _
    %813 = vsyncpa [#allocation5], 1
    %814 = vsyncpa [#allocation6], 1

// kernel: tpu_custom_call.1
$region0: #{tpu_custom_call.1}
  #allocation0 [shape = 'u32[]', space=smem, size = 0x4, offset = 0x4, fixed_abs, tag = 'smem constant byte address 0x4 - core index']
  #allocation1 [shape = 'u32[144,128]{1,0:T(1,128)}', space=vmem, size = 0x12000, scoped, tag = 'internal scratch']
  #allocation2 [shape = 'f32[8,128]{1,0:T(8,128)}', space=vmem, size = 0x1000, scoped, tag = 'scratch operand']
  #allocation3 [shape = 'f32[1,1]{1,0:T(1,128)}', space=vmem, size = 0x200, scoped, tag = 'scratch operand']
  %s0 = inlined_call_operand.hbm [shape: f32[128,128], index: 0, kind: input, shape index: {}]
  %s1 = inlined_call_operand.vmem [shape: f32[8,128], index: 1, kind: input, shape index: {}]
  %s2 = inlined_call_operand.vmem [shape: f32[8,1], index: 2, kind: input, shape index: {}]
  %s3 = inlined_call_operand.vmem [shape: f32[8,1], index: 3, kind: input, shape index: {}]
  %s4 = inlined_call_operand.vmem [shape: f32[8,1], index: 4, kind: input, shape index: {}]
  %s5 = inlined_call_operand.hbm [shape: f32[8,128], index: 5, kind: output, shape index: {}]
  %s6 = sld [smem:[#allocation0]]
  $region41: #{tpu_custom_call.1} parent=0
    _
  %s8 = ssub.s32 1, %s6
  %s9 = scalar_select 0, %s8, %s6
  $region1: #{tpu_custom_call.1} parent=0
    #allocation4 [shape = 'u8[65536]{0}', space=vmem, size = 0x10000, scoped, tag = 'input window, operand 0, single buffered']
    #allocation5 [shape = 's32[1]{0}', space=sflag, size = 0x4, scoped, tag = 'scoped memory for tpu_custom_call.1']
    #allocation6 [shape = 's32[1]{0}', space=sflag, size = 0x4, scoped, tag = 'scoped memory for tpu_custom_call.1']
    #allocation7 [shape = 'u8[4096]{0}', space=vmem, size = 0x1000, scoped, tag = 'output window, operand 0, single buffered']
    %10 = vsyncpa [#allocation5], 0
    %11 = vsyncpa [#allocation6], 0
    // Predicated region
    $region2: #{tpu_custom_call.1} parent=1 // pred_check
      _
    $region3: #{tpu_custom_call.1} parent=1 // pred_check_branch
      %13 = sbr.rel (0) target = $region5
    $region4: #{tpu_custom_call.1} parent=1 // pred_region
      %s15 = ssub.s32 2048, 2048
      %16 = vsyncadd [#allocation5], %s15
      %s17 = sshll.u32 [#allocation4], 4
      %s18 = int_to_ptr.vmem [resolvable:$true] %s17
      %23 = dma.hbm_to_vmem [thread:$0]  %s0, 2048, %s18, [#allocation5], 128, 128, 8
    $region5: #{tpu_custom_call.1} parent=1 // pred_fallthru
      _
    // Predicated region
    $region6: #{tpu_custom_call.1} parent=1 // pred_check
      _
    $region7: #{tpu_custom_call.1} parent=1 // pred_check_branch
      %25 = sbr.rel (0) target = $region9
    $region8: #{tpu_custom_call.1} parent=1 // pred_region
      _
    $region9: #{tpu_custom_call.1} parent=1 // pred_fallthru
      _
    // Predicated region
    $region10: #{tpu_custom_call.1} parent=1 // pred_check
      _
    $region11: #{tpu_custom_call.1} parent=1 // pred_check_branch
      %27 = sbr.rel (0) target = $region13
    $region12: #{tpu_custom_call.1} parent=1 // pred_region
      _
    $region13: #{tpu_custom_call.1} parent=1 // pred_fallthru
      _
    // Predicated region
    $region14: #{tpu_custom_call.1} parent=1 // pred_check
      _
    $region15: #{tpu_custom_call.1} parent=1 // pred_check_branch
      %29 = sbr.rel (0) target = $region17
    $region16: #{tpu_custom_call.1} parent=1 // pred_region
      _
    $region17: #{tpu_custom_call.1} parent=1 // pred_fallthru
      _
    // Predicated region
    $region18: #{tpu_custom_call.1} parent=1 // pred_check
      _
    $region19: #{tpu_custom_call.1} parent=1 // pred_check_branch
      %31 = sbr.rel (0) target = $region21
    $region20: #{tpu_custom_call.1} parent=1 // pred_region
      _
    $region21: #{tpu_custom_call.1} parent=1 // pred_fallthru
      _
    // Predicated region
    $region22: #{tpu_custom_call.1} parent=1 // pred_check
      _
    $region23: #{tpu_custom_call.1} parent=1 // pred_check_branch
      %33 = sbr.rel (0) target = $region25
    $region24: #{tpu_custom_call.1} parent=1 // pred_region
      %34 = dma.done [#allocation5], 2048
    $region25: #{tpu_custom_call.1} parent=1 // pred_fallthru
      _
    %v35 = vld [vmem:[%s3] sm:$0xff]
    %v36 = vld [vmem:[%s4] sm:$0xff]
    %v37 = vlaneseq
    %v38 = vand.u32 %v37, 127
    %v39 = vld [vmem:[%s2] sm:$0xff]
    %v40 = vld [vmem:[%s1] sm:$0xff]
    %41 = vst [vmem:[#allocation2] sm:$0xff] %v40
    %vm42 = vcmp.eq.s32.totalorder %v38, 0
    %44 = vset.pattern.permute.xlu0 0
    %45 = vperm.xlu0 %44, %v39
    %v46 = vpop.permute.xlu0 %45
    %v48 = vsel %vm42, %v46, 0.0
    %49 = vst [vmem:[#allocation7] sm:$0xff] %v48
    %vm50 = vcmp.gt.f32.partialorder %v39, %v35
    %v51 = vsel %vm50, 1, 0
    %v52 = vcvt.s32.f32 %v51
    %vm53 = vcmask 7168
    %v54 = vsel %vm53, %v52, -inf
    %v55 = vrot.slane %v54, 4
    %v56 = vmax.f32 %v54, %v55
    %v57 = vrot.slane %v56, 2
    %v58 = vmax.f32 %v56, %v57
    %v59 = vrot.slane %v58, 1
    %v60 = vmax.f32 %v58, %v59
    %vm61 = vcmask 0
    %62 = vst.msk [vmem:[#allocation3] sm:$0x1] %vm61, %v60
    loop: start=0, step=1, limit=12
    $region26: #{tpu_custom_call.1} parent=1 // loop_pre_header
      _
    $region27: #{tpu_custom_call.1} parent=1 // loop_header
      %s64 = sphi 0, %s68
      %p65 = scmp.ge.s32.totalorder %s64, 12
    $region28: #{tpu_custom_call.1} parent=1 // loop_header_branch
      %67 = sbr.rel (%p65) target = $region32
    $region29: #{tpu_custom_call.1} parent=1 // loop_body
      %v69 = vld [vmem:[#allocation3] sm:$0x1]
      %v70 = vld [vmem:[#allocation2] sm:$0xff]
      %v71 = vld [vmem:[#allocation4] sm:$0xff]
      %v72 = vld [vmem:[#allocation4 + $0x8] sm:$0xff]
      %v73 = vld [vmem:[#allocation4 + $0x10] sm:$0xff]
      %v74 = vld [vmem:[#allocation4 + $0x18] sm:$0xff]
      %v75 = vld [vmem:[#allocation4 + $0x20] sm:$0xff]
      %v76 = vld [vmem:[#allocation4 + $0x28] sm:$0xff]
      %v77 = vld [vmem:[#allocation4 + $0x30] sm:$0xff]
      %v78 = vld [vmem:[#allocation4 + $0x38] sm:$0xff]
      %v79 = vld [vmem:[#allocation4 + $0x40] sm:$0xff]
      %v80 = vld [vmem:[#allocation4 + $0x48] sm:$0xff]
      %v81 = vld [vmem:[#allocation4 + $0x50] sm:$0xff]
      %v82 = vld [vmem:[#allocation4 + $0x58] sm:$0xff]
      %v83 = vld [vmem:[#allocation4 + $0x60] sm:$0xff]
      %v84 = vld [vmem:[#allocation4 + $0x68] sm:$0xff]
      %v85 = vld [vmem:[#allocation4 + $0x70] sm:$0xff]
      %v86 = vld [vmem:[#allocation4 + $0x78] sm:$0xff]
      %87 = vmatprep.subr.mxu0 0.0
      %v88 = vand.u32 %v86, 4294901760
      %89 = vmatpush1.msra.mxu0 %v88
      %90 = vmatprep.subr.mxu0 0.0
      %v91 = vand.u32 %v85, 4294901760
      %92 = vmatpush1.msra.mxu0 %v91
      %93 = vmatprep.subr.mxu0 0.0
      %v94 = vand.u32 %v84, 4294901760
      %95 = vmatpush1.msra.mxu0 %v94
      %96 = vmatprep.subr.mxu0 0.0
      %v97 = vand.u32 %v83, 4294901760
      %98 = vmatpush1.msra.mxu0 %v97
      %99 = vmatprep.subr.mxu0 0.0
      %v100 = vand.u32 %v82, 4294901760
      %101 = vmatpush1.msra.mxu0 %v100
      %102 = vmatprep.subr.mxu0 0.0
      %v103 = vand.u32 %v81, 4294901760
      %104 = vmatpush1.msra.mxu0 %v103
      %105 = vmatprep.subr.mxu0 0.0
      %v106 = vand.u32 %v80, 4294901760
      %107 = vmatpush1.msra.mxu0 %v106
      %108 = vmatprep.subr.mxu0 0.0
      %v109 = vand.u32 %v79, 4294901760
      %110 = vmatpush1.msra.mxu0 %v109
      %111 = vmatprep.subr.mxu0 0.0
      %v112 = vand.u32 %v78, 4294901760
      %113 = vmatpush1.msra.mxu0 %v112
      %114 = vmatprep.subr.mxu0 0.0
      %v115 = vand.u32 %v77, 4294901760
      %116 = vmatpush1.msra.mxu0 %v115
      %117 = vmatprep.subr.mxu0 0.0
      %v118 = vand.u32 %v76, 4294901760
      %119 = vmatpush1.msra.mxu0 %v118
      %120 = vmatprep.subr.mxu0 0.0
      %v121 = vand.u32 %v75, 4294901760
      %122 = vmatpush1.msra.mxu0 %v121
      %123 = vmatprep.subr.mxu0 0.0
      %v124 = vand.u32 %v74, 4294901760
      %125 = vmatpush1.msra.mxu0 %v124
      %126 = vmatprep.subr.mxu0 0.0
      %v127 = vand.u32 %v73, 4294901760
      %128 = vmatpush1.msra.mxu0 %v127
      %129 = vmatprep.subr.mxu0 0.0
      %v130 = vand.u32 %v72, 4294901760
      %131 = vmatpush1.msra.mxu0 %v130
      %132 = vmatprep.subr.mxu0 0.0
      %v133 = vand.u32 %v71, 4294901760
      %134 = vmatpush1.msra.mxu0 %v133
      %135 = vmatprep.subr.mxu0 0.0
      %136 = vmatpush2.msra.mxu0 0.0
      %137 = vmatprep.subr.mxu0 0.0
      %138 = vmatpush2.msra.mxu0 0.0
      %139 = vmatprep.subr.mxu0 0.0
      %140 = vmatpush2.msra.mxu0 0.0
      %141 = vmatprep.subr.mxu0 0.0
      %142 = vmatpush2.msra.mxu0 0.0
      %143 = vmatprep.subr.mxu0 0.0
      %144 = vmatpush2.msra.mxu0 0.0
      %145 = vmatprep.subr.mxu0 0.0
      %146 = vmatpush2.msra.mxu0 0.0
      %147 = vmatprep.subr.mxu0 0.0
      %148 = vmatpush2.msra.mxu0 0.0
      %149 = vmatprep.subr.mxu0 0.0
      %150 = vmatpush2.msra.mxu0 0.0
      %151 = vmatprep.subr.mxu0 0.0
      %152 = vmatpush2.msra.mxu0 0.0
      %153 = vmatprep.subr.mxu0 0.0
      %154 = vmatpush2.msra.mxu0 0.0
      %155 = vmatprep.subr.mxu0 0.0
      %156 = vmatpush2.msra.mxu0 0.0
      %157 = vmatprep.subr.mxu0 0.0
      %158 = vmatpush2.msra.mxu0 0.0
      %159 = vmatprep.subr.mxu0 0.0
      %160 = vmatpush2.msra.mxu0 0.0
      %161 = vmatprep.subr.mxu0 0.0
      %162 = vmatpush2.msra.mxu0 0.0
      %163 = vmatprep.subr.mxu0 0.0
      %164 = vmatpush2.msra.mxu0 0.0
      %165 = vmatprep.subr.mxu0 0.0
      %166 = vmatpush2.msra.mxu0 0.0
      %167 = vmatprep.mubr.f32.mxu0 0.0
      %v168 = vand.u32 %v70, 4294901760
      %v169 = vsub.f32 %v70, %v168
      %v170 = vand.u32 %v169, 4294901760
      %v171 = vsub.f32 %v169, %v170
      %v172 = vand.u32 %v171, 4294901760
      %173 = vmatmul.mubr.f32.gmra.mxu0 %v172
      %v174 = vpop.f32.mrf.mxu0
      %v175 = vadd.f32 0.0, %v174
      %v176 = vpop.f32.mrf.mxu0
      %177 = vdwg.mxu0
      %178 = vmatprep.subr.mxu0 0.0
      %v179 = vand.u32 %v86, 4294901760
      %v180 = vsub.f32 %v86, %v179
      %v181 = vand.u32 %v180, 4294901760
      %v182 = vsub.f32 %v180, %v181
      %v183 = vand.u32 %v182, 4294901760
      %184 = vmatpush1.msra.mxu0 %v183
      %185 = vmatprep.subr.mxu0 0.0
      %v186 = vand.u32 %v85, 4294901760
      %v187 = vsub.f32 %v85, %v186
      %v188 = vand.u32 %v187, 4294901760
      %v189 = vsub.f32 %v187, %v188
      %v190 = vand.u32 %v189, 4294901760
      %191 = vmatpush1.msra.mxu0 %v190
      %192 = vmatprep.subr.mxu0 0.0
      %v193 = vand.u32 %v84, 4294901760
      %v194 = vsub.f32 %v84, %v193
      %v195 = vand.u32 %v194, 4294901760
      %v196 = vsub.f32 %v194, %v195
      %v197 = vand.u32 %v196, 4294901760
      %198 = vmatpush1.msra.mxu0 %v197
      %199 = vmatprep.subr.mxu0 0.0
      %v200 = vand.u32 %v83, 4294901760
      %v201 = vsub.f32 %v83, %v200
      %v202 = vand.u32 %v201, 4294901760
      %v203 = vsub.f32 %v201, %v202
      %v204 = vand.u32 %v203, 4294901760
      %205 = vmatpush1.msra.mxu0 %v204
      %206 = vmatprep.subr.mxu0 0.0
      %v207 = vand.u32 %v82, 4294901760
      %v208 = vsub.f32 %v82, %v207
      %v209 = vand.u32 %v208, 4294901760
      %v210 = vsub.f32 %v208, %v209
      %v211 = vand.u32 %v210, 4294901760
      %212 = vmatpush1.msra.mxu0 %v211
      %213 = vmatprep.subr.mxu0 0.0
      %v214 = vand.u32 %v81, 4294901760
      %v215 = vsub.f32 %v81, %v214
      %v216 = vand.u32 %v215, 4294901760
      %v217 = vsub.f32 %v215, %v216
      %v218 = vand.u32 %v217, 4294901760
      %219 = vmatpush1.msra.mxu0 %v218
      %220 = vmatprep.subr.mxu0 0.0
      %v221 = vand.u32 %v80, 4294901760
      %v222 = vsub.f32 %v80, %v221
      %v223 = vand.u32 %v222, 4294901760
      %v224 = vsub.f32 %v222, %v223
      %v225 = vand.u32 %v224, 4294901760
      %226 = vmatpush1.msra.mxu0 %v225
      %227 = vmatprep.subr.mxu0 0.0
      %v228 = vand.u32 %v79, 4294901760
      %v229 = vsub.f32 %v79, %v228
      %v230 = vand.u32 %v229, 4294901760
      %v231 = vsub.f32 %v229, %v230
      %v232 = vand.u32 %v231, 4294901760
      %233 = vmatpush1.msra.mxu0 %v232
      %234 = vmatprep.subr.mxu0 0.0
      %v235 = vand.u32 %v78, 4294901760
      %v236 = vsub.f32 %v78, %v235
      %v237 = vand.u32 %v236, 4294901760
      %v238 = vsub.f32 %v236, %v237
      %v239 = vand.u32 %v238, 4294901760
      %240 = vmatpush1.msra.mxu0 %v239
      %241 = vmatprep.subr.mxu0 0.0
      %v242 = vand.u32 %v77, 4294901760
      %v243 = vsub.f32 %v77, %v242
      %v244 = vand.u32 %v243, 4294901760
      %v245 = vsub.f32 %v243, %v244
      %v246 = vand.u32 %v245, 4294901760
      %247 = vmatpush1.msra.mxu0 %v246
      %248 = vmatprep.subr.mxu0 0.0
      %v249 = vand.u32 %v76, 4294901760
      %v250 = vsub.f32 %v76, %v249
      %v251 = vand.u32 %v250, 4294901760
      %v252 = vsub.f32 %v250, %v251
      %v253 = vand.u32 %v252, 4294901760
      %254 = vmatpush1.msra.mxu0 %v253
      %255 = vmatprep.subr.mxu0 0.0
      %v256 = vand.u32 %v75, 4294901760
      %v257 = vsub.f32 %v75, %v256
      %v258 = vand.u32 %v257, 4294901760
      %v259 = vsub.f32 %v257, %v258
      %v260 = vand.u32 %v259, 4294901760
      %261 = vmatpush1.msra.mxu0 %v260
      %262 = vmatprep.subr.mxu0 0.0
      %v263 = vand.u32 %v74, 4294901760
      %v264 = vsub.f32 %v74, %v263
      %v265 = vand.u32 %v264, 4294901760
      %v266 = vsub.f32 %v264, %v265
      %v267 = vand.u32 %v266, 4294901760
      %268 = vmatpush1.msra.mxu0 %v267
      %269 = vmatprep.subr.mxu0 0.0
      %v270 = vand.u32 %v73, 4294901760
      %v271 = vsub.f32 %v73, %v270
      %v272 = vand.u32 %v271, 4294901760
      %v273 = vsub.f32 %v271, %v272
      %v274 = vand.u32 %v273, 4294901760
      %275 = vmatpush1.msra.mxu0 %v274
      %276 = vmatprep.subr.mxu0 0.0
      %v277 = vand.u32 %v72, 4294901760
      %v278 = vsub.f32 %v72, %v277
      %v279 = vand.u32 %v278, 4294901760
      %v280 = vsub.f32 %v278, %v279
      %v281 = vand.u32 %v280, 4294901760
      %282 = vmatpush1.msra.mxu0 %v281
      %283 = vmatprep.subr.mxu0 0.0
      %v284 = vand.u32 %v71, 4294901760
      %v285 = vsub.f32 %v71, %v284
      %v286 = vand.u32 %v285, 4294901760
      %v287 = vsub.f32 %v285, %v286
      %v288 = vand.u32 %v287, 4294901760
      %289 = vmatpush1.msra.mxu0 %v288
      %290 = vmatprep.subr.mxu0 0.0
      %291 = vmatpush2.msra.mxu0 0.0
      %292 = vmatprep.subr.mxu0 0.0
      %293 = vmatpush2.msra.mxu0 0.0
      %294 = vmatprep.subr.mxu0 0.0
      %295 = vmatpush2.msra.mxu0 0.0
      %296 = vmatprep.subr.mxu0 0.0
      %297 = vmatpush2.msra.mxu0 0.0
      %298 = vmatprep.subr.mxu0 0.0
      %299 = vmatpush2.msra.mxu0 0.0
      %300 = vmatprep.subr.mxu0 0.0
      %301 = vmatpush2.msra.mxu0 0.0
      %302 = vmatprep.subr.mxu0 0.0
      %303 = vmatpush2.msra.mxu0 0.0
      %304 = vmatprep.subr.mxu0 0.0
      %305 = vmatpush2.msra.mxu0 0.0
      %306 = vmatprep.subr.mxu0 0.0
      %307 = vmatpush2.msra.mxu0 0.0
      %308 = vmatprep.subr.mxu0 0.0
      %309 = vmatpush2.msra.mxu0 0.0
      %310 = vmatprep.subr.mxu0 0.0
      %311 = vmatpush2.msra.mxu0 0.0
      %312 = vmatprep.subr.mxu0 0.0
      %313 = vmatpush2.msra.mxu0 0.0
      %314 = vmatprep.subr.mxu0 0.0
      %315 = vmatpush2.msra.mxu0 0.0
      %316 = vmatprep.subr.mxu0 0.0
      %317 = vmatpush2.msra.mxu0 0.0
      %318 = vmatprep.subr.mxu0 0.0
      %319 = vmatpush2.msra.mxu0 0.0
      %320 = vmatprep.subr.mxu0 0.0
      %321 = vmatpush2.msra.mxu0 0.0
      %322 = vmatprep.mubr.f32.mxu0 0.0
      %v323 = vand.u32 %v70, 4294901760
      %324 = vmatmul.mubr.f32.gmra.mxu0 %v323
      %v325 = vpop.f32.mrf.mxu0
      %v326 = vadd.f32 %v175, %v325
      %v327 = vpop.f32.mrf.mxu0
      %328 = vdwg.mxu0
      %329 = vmatprep.subr.mxu0 0.0
      %v330 = vand.u32 %v86, 4294901760
      %v331 = vsub.f32 %v86, %v330
      %332 = vmatpush1.msra.mxu0 %v331
      %333 = vmatprep.subr.mxu0 0.0
      %v334 = vand.u32 %v85, 4294901760
      %v335 = vsub.f32 %v85, %v334
      %336 = vmatpush1.msra.mxu0 %v335
      %337 = vmatprep.subr.mxu0 0.0
      %v338 = vand.u32 %v84, 4294901760
      %v339 = vsub.f32 %v84, %v338
      %340 = vmatpush1.msra.mxu0 %v339
      %341 = vmatprep.subr.mxu0 0.0
      %v342 = vand.u32 %v83, 4294901760
      %v343 = vsub.f32 %v83, %v342
      %344 = vmatpush1.msra.mxu0 %v343
      %345 = vmatprep.subr.mxu0 0.0
      %v346 = vand.u32 %v82, 4294901760
      %v347 = vsub.f32 %v82, %v346
      %348 = vmatpush1.msra.mxu0 %v347
      %349 = vmatprep.subr.mxu0 0.0
      %v350 = vand.u32 %v81, 4294901760
      %v351 = vsub.f32 %v81, %v350
      %352 = vmatpush1.msra.mxu0 %v351
      %353 = vmatprep.subr.mxu0 0.0
      %v354 = vand.u32 %v80, 4294901760
      %v355 = vsub.f32 %v80, %v354
      %356 = vmatpush1.msra.mxu0 %v355
      %357 = vmatprep.subr.mxu0 0.0
      %v358 = vand.u32 %v79, 4294901760
      %v359 = vsub.f32 %v79, %v358
      %360 = vmatpush1.msra.mxu0 %v359
      %361 = vmatprep.subr.mxu0 0.0
      %v362 = vand.u32 %v78, 4294901760
      %v363 = vsub.f32 %v78, %v362
      %364 = vmatpush1.msra.mxu0 %v363
      %365 = vmatprep.subr.mxu0 0.0
      %v366 = vand.u32 %v77, 4294901760
      %v367 = vsub.f32 %v77, %v366
      %368 = vmatpush1.msra.mxu0 %v367
      %369 = vmatprep.subr.mxu0 0.0
      %v370 = vand.u32 %v76, 4294901760
      %v371 = vsub.f32 %v76, %v370
      %372 = vmatpush1.msra.mxu0 %v371
      %373 = vmatprep.subr.mxu0 0.0
      %v374 = vand.u32 %v75, 4294901760
      %v375 = vsub.f32 %v75, %v374
      %376 = vmatpush1.msra.mxu0 %v375
      %377 = vmatprep.subr.mxu0 0.0
      %v378 = vand.u32 %v74, 4294901760
      %v379 = vsub.f32 %v74, %v378
      %380 = vmatpush1.msra.mxu0 %v379
      %381 = vmatprep.subr.mxu0 0.0
      %v382 = vand.u32 %v73, 4294901760
      %v383 = vsub.f32 %v73, %v382
      %384 = vmatpush1.msra.mxu0 %v383
      %385 = vmatprep.subr.mxu0 0.0
      %v386 = vand.u32 %v72, 4294901760
      %v387 = vsub.f32 %v72, %v386
      %388 = vmatpush1.msra.mxu0 %v387
      %389 = vmatprep.subr.mxu0 0.0
      %v390 = vand.u32 %v71, 4294901760
      %v391 = vsub.f32 %v71, %v390
      %392 = vmatpush1.msra.mxu0 %v391
      %393 = vmatprep.subr.mxu0 0.0
      %394 = vmatpush2.msra.mxu0 0.0
      %395 = vmatprep.subr.mxu0 0.0
      %396 = vmatpush2.msra.mxu0 0.0
      %397 = vmatprep.subr.mxu0 0.0
      %398 = vmatpush2.msra.mxu0 0.0
      %399 = vmatprep.subr.mxu0 0.0
      %400 = vmatpush2.msra.mxu0 0.0
      %401 = vmatprep.subr.mxu0 0.0
      %402 = vmatpush2.msra.mxu0 0.0
      %403 = vmatprep.subr.mxu0 0.0
      %404 = vmatpush2.msra.mxu0 0.0
      %405 = vmatprep.subr.mxu0 0.0
      %406 = vmatpush2.msra.mxu0 0.0
      %407 = vmatprep.subr.mxu0 0.0
      %408 = vmatpush2.msra.mxu0 0.0
      %409 = vmatprep.subr.mxu0 0.0
      %410 = vmatpush2.msra.mxu0 0.0
      %411 = vmatprep.subr.mxu0 0.0
      %412 = vmatpush2.msra.mxu0 0.0
      %413 = vmatprep.subr.mxu0 0.0
      %414 = vmatpush2.msra.mxu0 0.0
      %415 = vmatprep.subr.mxu0 0.0
      %416 = vmatpush2.msra.mxu0 0.0
      %417 = vmatprep.subr.mxu0 0.0
      %418 = vmatpush2.msra.mxu0 0.0
      %419 = vmatprep.subr.mxu0 0.0
      %420 = vmatpush2.msra.mxu0 0.0
      %421 = vmatprep.subr.mxu0 0.0
      %422 = vmatpush2.msra.mxu0 0.0
      %423 = vmatprep.subr.mxu0 0.0
      %424 = vmatpush2.msra.mxu0 0.0
      %425 = vmatprep.mubr.f32.mxu0 0.0
      %v426 = vand.u32 %v70, 4294901760
      %v427 = vsub.f32 %v70, %v426
      %428 = vmatmul.mubr.f32.gmra.mxu0 %v427
      %v429 = vpop.f32.mrf.mxu0
      %v430 = vadd.f32 %v326, %v429
      %v431 = vpop.f32.mrf.mxu0
      %432 = vdwg.mxu0
      %433 = vmatprep.subr.mxu0 0.0
      %v434 = vand.u32 %v86, 4294901760
      %435 = vmatpush1.msra.mxu0 %v434
      %436 = vmatprep.subr.mxu0 0.0
      %v437 = vand.u32 %v85, 4294901760
      %438 = vmatpush1.msra.mxu0 %v437
      %439 = vmatprep.subr.mxu0 0.0
      %v440 = vand.u32 %v84, 4294901760
      %441 = vmatpush1.msra.mxu0 %v440
      %442 = vmatprep.subr.mxu0 0.0
      %v443 = vand.u32 %v83, 4294901760
      %444 = vmatpush1.msra.mxu0 %v443
      %445 = vmatprep.subr.mxu0 0.0
      %v446 = vand.u32 %v82, 4294901760
      %447 = vmatpush1.msra.mxu0 %v446
      %448 = vmatprep.subr.mxu0 0.0
      %v449 = vand.u32 %v81, 4294901760
      %450 = vmatpush1.msra.mxu0 %v449
      %451 = vmatprep.subr.mxu0 0.0
      %v452 = vand.u32 %v80, 4294901760
      %453 = vmatpush1.msra.mxu0 %v452
      %454 = vmatprep.subr.mxu0 0.0
      %v455 = vand.u32 %v79, 4294901760
      %456 = vmatpush1.msra.mxu0 %v455
      %457 = vmatprep.subr.mxu0 0.0
      %v458 = vand.u32 %v78, 4294901760
      %459 = vmatpush1.msra.mxu0 %v458
      %460 = vmatprep.subr.mxu0 0.0
      %v461 = vand.u32 %v77, 4294901760
      %462 = vmatpush1.msra.mxu0 %v461
      %463 = vmatprep.subr.mxu0 0.0
      %v464 = vand.u32 %v76, 4294901760
      %465 = vmatpush1.msra.mxu0 %v464
      %466 = vmatprep.subr.mxu0 0.0
      %v467 = vand.u32 %v75, 4294901760
      %468 = vmatpush1.msra.mxu0 %v467
      %469 = vmatprep.subr.mxu0 0.0
      %v470 = vand.u32 %v74, 4294901760
      %471 = vmatpush1.msra.mxu0 %v470
      %472 = vmatprep.subr.mxu0 0.0
      %v473 = vand.u32 %v73, 4294901760
      %474 = vmatpush1.msra.mxu0 %v473
      %475 = vmatprep.subr.mxu0 0.0
      %v476 = vand.u32 %v72, 4294901760
      %477 = vmatpush1.msra.mxu0 %v476
      %478 = vmatprep.subr.mxu0 0.0
      %v479 = vand.u32 %v71, 4294901760
      %480 = vmatpush1.msra.mxu0 %v479
      %481 = vmatprep.subr.mxu0 0.0
      %482 = vmatpush2.msra.mxu0 0.0
      %483 = vmatprep.subr.mxu0 0.0
      %484 = vmatpush2.msra.mxu0 0.0
      %485 = vmatprep.subr.mxu0 0.0
      %486 = vmatpush2.msra.mxu0 0.0
      %487 = vmatprep.subr.mxu0 0.0
      %488 = vmatpush2.msra.mxu0 0.0
      %489 = vmatprep.subr.mxu0 0.0
      %490 = vmatpush2.msra.mxu0 0.0
      %491 = vmatprep.subr.mxu0 0.0
      %492 = vmatpush2.msra.mxu0 0.0
      %493 = vmatprep.subr.mxu0 0.0
      %494 = vmatpush2.msra.mxu0 0.0
      %495 = vmatprep.subr.mxu0 0.0
      %496 = vmatpush2.msra.mxu0 0.0
      %497 = vmatprep.subr.mxu0 0.0
      %498 = vmatpush2.msra.mxu0 0.0
      %499 = vmatprep.subr.mxu0 0.0
      %500 = vmatpush2.msra.mxu0 0.0
      %501 = vmatprep.subr.mxu0 0.0
      %502 = vmatpush2.msra.mxu0 0.0
      %503 = vmatprep.subr.mxu0 0.0
      %504 = vmatpush2.msra.mxu0 0.0
      %505 = vmatprep.subr.mxu0 0.0
      %506 = vmatpush2.msra.mxu0 0.0
      %507 = vmatprep.subr.mxu0 0.0
      %508 = vmatpush2.msra.mxu0 0.0
      %509 = vmatprep.subr.mxu0 0.0
      %510 = vmatpush2.msra.mxu0 0.0
      %511 = vmatprep.subr.mxu0 0.0
      %512 = vmatpush2.msra.mxu0 0.0
      %513 = vmatprep.mubr.f32.mxu0 0.0
      %v514 = vand.u32 %v70, 4294901760
      %v515 = vsub.f32 %v70, %v514
      %v516 = vand.u32 %v515, 4294901760
      %517 = vmatmul.mubr.f32.gmra.mxu0 %v516
      %v518 = vpop.f32.mrf.mxu0
      %v519 = vadd.f32 %v430, %v518
      %v520 = vpop.f32.mrf.mxu0
      %521 = vdwg.mxu0
      %522 = vmatprep.subr.mxu0 0.0
      %v523 = vand.u32 %v86, 4294901760
      %v524 = vsub.f32 %v86, %v523
      %v525 = vand.u32 %v524, 4294901760
      %526 = vmatpush1.msra.mxu0 %v525
      %527 = vmatprep.subr.mxu0 0.0
      %v528 = vand.u32 %v85, 4294901760
      %v529 = vsub.f32 %v85, %v528
      %v530 = vand.u32 %v529, 4294901760
      %531 = vmatpush1.msra.mxu0 %v530
      %532 = vmatprep.subr.mxu0 0.0
      %v533 = vand.u32 %v84, 4294901760
      %v534 = vsub.f32 %v84, %v533
      %v535 = vand.u32 %v534, 4294901760
      %536 = vmatpush1.msra.mxu0 %v535
      %537 = vmatprep.subr.mxu0 0.0
      %v538 = vand.u32 %v83, 4294901760
      %v539 = vsub.f32 %v83, %v538
      %v540 = vand.u32 %v539, 4294901760
      %541 = vmatpush1.msra.mxu0 %v540
      %542 = vmatprep.subr.mxu0 0.0
      %v543 = vand.u32 %v82, 4294901760
      %v544 = vsub.f32 %v82, %v543
      %v545 = vand.u32 %v544, 4294901760
      %546 = vmatpush1.msra.mxu0 %v545
      %547 = vmatprep.subr.mxu0 0.0
      %v548 = vand.u32 %v81, 4294901760
      %v549 = vsub.f32 %v81, %v548
      %v550 = vand.u32 %v549, 4294901760
      %551 = vmatpush1.msra.mxu0 %v550
      %552 = vmatprep.subr.mxu0 0.0
      %v553 = vand.u32 %v80, 4294901760
      %v554 = vsub.f32 %v80, %v553
      %v555 = vand.u32 %v554, 4294901760
      %556 = vmatpush1.msra.mxu0 %v555
      %557 = vmatprep.subr.mxu0 0.0
      %v558 = vand.u32 %v79, 4294901760
      %v559 = vsub.f32 %v79, %v558
      %v560 = vand.u32 %v559, 4294901760
      %561 = vmatpush1.msra.mxu0 %v560
      %562 = vmatprep.subr.mxu0 0.0
      %v563 = vand.u32 %v78, 4294901760
      %v564 = vsub.f32 %v78, %v563
      %v565 = vand.u32 %v564, 4294901760
      %566 = vmatpush1.msra.mxu0 %v565
      %567 = vmatprep.subr.mxu0 0.0
      %v568 = vand.u32 %v77, 4294901760
      %v569 = vsub.f32 %v77, %v568
      %v570 = vand.u32 %v569, 4294901760
      %571 = vmatpush1.msra.mxu0 %v570
      %572 = vmatprep.subr.mxu0 0.0
      %v573 = vand.u32 %v76, 4294901760
      %v574 = vsub.f32 %v76, %v573
      %v575 = vand.u32 %v574, 4294901760
      %576 = vmatpush1.msra.mxu0 %v575
      %577 = vmatprep.subr.mxu0 0.0
      %v578 = vand.u32 %v75, 4294901760
      %v579 = vsub.f32 %v75, %v578
      %v580 = vand.u32 %v579, 4294901760
      %581 = vmatpush1.msra.mxu0 %v580
      %582 = vmatprep.subr.mxu0 0.0
      %v583 = vand.u32 %v74, 4294901760
      %v584 = vsub.f32 %v74, %v583
      %v585 = vand.u32 %v584, 4294901760
      %586 = vmatpush1.msra.mxu0 %v585
      %587 = vmatprep.subr.mxu0 0.0
      %v588 = vand.u32 %v73, 4294901760
      %v589 = vsub.f32 %v73, %v588
      %v590 = vand.u32 %v589, 4294901760
      %591 = vmatpush1.msra.mxu0 %v590
      %592 = vmatprep.subr.mxu0 0.0
      %v593 = vand.u32 %v72, 4294901760
      %v594 = vsub.f32 %v72, %v593
      %v595 = vand.u32 %v594, 4294901760
      %596 = vmatpush1.msra.mxu0 %v595
      %597 = vmatprep.subr.mxu0 0.0
      %v598 = vand.u32 %v71, 4294901760
      %v599 = vsub.f32 %v71, %v598
      %v600 = vand.u32 %v599, 4294901760
      %601 = vmatpush1.msra.mxu0 %v600
      %602 = vmatprep.subr.mxu0 0.0
      %603 = vmatpush2.msra.mxu0 0.0
      %604 = vmatprep.subr.mxu0 0.0
      %605 = vmatpush2.msra.mxu0 0.0
      %606 = vmatprep.subr.mxu0 0.0
      %607 = vmatpush2.msra.mxu0 0.0
      %608 = vmatprep.subr.mxu0 0.0
      %609 = vmatpush2.msra.mxu0 0.0
      %610 = vmatprep.subr.mxu0 0.0
      %611 = vmatpush2.msra.mxu0 0.0
      %612 = vmatprep.subr.mxu0 0.0
      %613 = vmatpush2.msra.mxu0 0.0
      %614 = vmatprep.subr.mxu0 0.0
      %615 = vmatpush2.msra.mxu0 0.0
      %616 = vmatprep.subr.mxu0 0.0
      %617 = vmatpush2.msra.mxu0 0.0
      %618 = vmatprep.subr.mxu0 0.0
      %619 = vmatpush2.msra.mxu0 0.0
      %620 = vmatprep.subr.mxu0 0.0
      %621 = vmatpush2.msra.mxu0 0.0
      %622 = vmatprep.subr.mxu0 0.0
      %623 = vmatpush2.msra.mxu0 0.0
      %624 = vmatprep.subr.mxu0 0.0
      %625 = vmatpush2.msra.mxu0 0.0
      %626 = vmatprep.subr.mxu0 0.0
      %627 = vmatpush2.msra.mxu0 0.0
      %628 = vmatprep.subr.mxu0 0.0
      %629 = vmatpush2.msra.mxu0 0.0
      %630 = vmatprep.subr.mxu0 0.0
      %631 = vmatpush2.msra.mxu0 0.0
      %632 = vmatprep.subr.mxu0 0.0
      %633 = vmatpush2.msra.mxu0 0.0
      %634 = vmatprep.mubr.f32.mxu0 0.0
      %v635 = vand.u32 %v70, 4294901760
      %636 = vmatmul.mubr.f32.gmra.mxu0 %v635
      %v637 = vpop.f32.mrf.mxu0
      %v638 = vadd.f32 %v519, %v637
      %v639 = vpop.f32.mrf.mxu0
      %640 = vdwg.mxu0
      %641 = vmatprep.subr.mxu0 0.0
      %v642 = vand.u32 %v86, 4294901760
      %643 = vmatpush1.msra.mxu0 %v642
      %644 = vmatprep.subr.mxu0 0.0
      %v645 = vand.u32 %v85, 4294901760
      %646 = vmatpush1.msra.mxu0 %v645
      %647 = vmatprep.subr.mxu0 0.0
      %v648 = vand.u32 %v84, 4294901760
      %649 = vmatpush1.msra.mxu0 %v648
      %650 = vmatprep.subr.mxu0 0.0
      %v651 = vand.u32 %v83, 4294901760
      %652 = vmatpush1.msra.mxu0 %v651
      %653 = vmatprep.subr.mxu0 0.0
      %v654 = vand.u32 %v82, 4294901760
      %655 = vmatpush1.msra.mxu0 %v654
      %656 = vmatprep.subr.mxu0 0.0
      %v657 = vand.u32 %v81, 4294901760
      %658 = vmatpush1.msra.mxu0 %v657
      %659 = vmatprep.subr.mxu0 0.0
      %v660 = vand.u32 %v80, 4294901760
      %661 = vmatpush1.msra.mxu0 %v660
      %662 = vmatprep.subr.mxu0 0.0
      %v663 = vand.u32 %v79, 4294901760
      %664 = vmatpush1.msra.mxu0 %v663
      %665 = vmatprep.subr.mxu0 0.0
      %v666 = vand.u32 %v78, 4294901760
      %667 = vmatpush1.msra.mxu0 %v666
      %668 = vmatprep.subr.mxu0 0.0
      %v669 = vand.u32 %v77, 4294901760
      %670 = vmatpush1.msra.mxu0 %v669
      %671 = vmatprep.subr.mxu0 0.0
      %v672 = vand.u32 %v76, 4294901760
      %673 = vmatpush1.msra.mxu0 %v672
      %674 = vmatprep.subr.mxu0 0.0
      %v675 = vand.u32 %v75, 4294901760
      %676 = vmatpush1.msra.mxu0 %v675
      %677 = vmatprep.subr.mxu0 0.0
      %v678 = vand.u32 %v74, 4294901760
      %679 = vmatpush1.msra.mxu0 %v678
      %680 = vmatprep.subr.mxu0 0.0
      %v681 = vand.u32 %v73, 4294901760
      %682 = vmatpush1.msra.mxu0 %v681
      %683 = vmatprep.subr.mxu0 0.0
      %v684 = vand.u32 %v72, 4294901760
      %685 = vmatpush1.msra.mxu0 %v684
      %686 = vmatprep.subr.mxu0 0.0
      %v687 = vand.u32 %v71, 4294901760
      %688 = vmatpush1.msra.mxu0 %v687
      %689 = vmatprep.subr.mxu0 0.0
      %690 = vmatpush2.msra.mxu0 0.0
      %691 = vmatprep.subr.mxu0 0.0
      %692 = vmatpush2.msra.mxu0 0.0
      %693 = vmatprep.subr.mxu0 0.0
      %694 = vmatpush2.msra.mxu0 0.0
      %695 = vmatprep.subr.mxu0 0.0
      %696 = vmatpush2.msra.mxu0 0.0
      %697 = vmatprep.subr.mxu0 0.0
      %698 = vmatpush2.msra.mxu0 0.0
      %699 = vmatprep.subr.mxu0 0.0
      %700 = vmatpush2.msra.mxu0 0.0
      %701 = vmatprep.subr.mxu0 0.0
      %702 = vmatpush2.msra.mxu0 0.0
      %703 = vmatprep.subr.mxu0 0.0
      %704 = vmatpush2.msra.mxu0 0.0
      %705 = vmatprep.subr.mxu0 0.0
      %706 = vmatpush2.msra.mxu0 0.0
      %707 = vmatprep.subr.mxu0 0.0
      %708 = vmatpush2.msra.mxu0 0.0
      %709 = vmatprep.subr.mxu0 0.0
      %710 = vmatpush2.msra.mxu0 0.0
      %711 = vmatprep.subr.mxu0 0.0
      %712 = vmatpush2.msra.mxu0 0.0
      %713 = vmatprep.subr.mxu0 0.0
      %714 = vmatpush2.msra.mxu0 0.0
      %715 = vmatprep.subr.mxu0 0.0
      %716 = vmatpush2.msra.mxu0 0.0
      %717 = vmatprep.subr.mxu0 0.0
      %718 = vmatpush2.msra.mxu0 0.0
      %719 = vmatprep.subr.mxu0 0.0
      %720 = vmatpush2.msra.mxu0 0.0
      %721 = vmatprep.mubr.f32.mxu0 0.0
      %v722 = vand.u32 %v70, 4294901760
      %723 = vmatmul.mubr.f32.gmra.mxu0 %v722
      %v724 = vpop.f32.mrf.mxu0
      %v725 = vadd.f32 %v638, %v724
      %v726 = vpop.f32.mrf.mxu0
      %727 = vdwg.mxu0
      %728 = vst [vmem:[#allocation2] sm:$0xff] %v725
      %v729 = vmul.f32 %v725, %v725
      %730 = vadd.xlane.f32.xlu0 %v729
      %v731 = vpop.xlane.xlu0 %730
      %v732 = vrsqrt.pop %v731
      %v733 = vmul.f32 %v731, %v732
      %vm734 = vcmp.eq.f32.partialorder %v731, inf
      %v735 = vsel %vm734, %v731, %v733
      %vm736 = vcmp.eq.f32.partialorder %v731, 0.0
      %v737 = vand.u32 %v731, 2147483648
      %v738 = vsel %vm736, %v737, %v735
      %v739 = vmul.f32 %v738, %v36
      %s740 = sadd.s32 %s64, 1
      %v741 = vstv %s740
      %vm742 = vcmp.eq.s32.totalorder %v38, %v741
      %vm743 = vcmp.gt.f32.partialorder %v69, 0.5
      %v744 = vsel %vm743, 1, 0
      %v745 = vlaneseq
      %v746 = vshrl.u32 %v745, 7
      %v747 = vsub.s32 0, %v746
      %v748 = vrot.slane %v744, %v747
      %749 = vset.pattern.permute.xlu0 0
      %750 = vperm.xlu0 %749, %v748
      %v751 = vpop.permute.xlu0 %750
      %vm752 = vcmp.eq.s32.totalorder %v751, 1
      %vm753 = vmand %vm742, %vm752
      %v754 = vld [vmem:[#allocation7] sm:$0xff]
      %756 = vset.pattern.permute.xlu0 0
      %757 = vperm.xlu0 %756, %v739
      %v758 = vpop.permute.xlu0 %757
      %v760 = vsel %vm753, %v758, %v754
      %761 = vst [vmem:[#allocation7] sm:$0xff] %v760
      %vm762 = vcmp.gt.f32.partialorder %v739, %v35
      %v763 = vsel %vm762, 1, 0
      %v764 = vcvt.s32.f32 %v763
      %v765 = vsel %vm53, %v764, -inf
      %v766 = vrot.slane %v765, 4
      %v767 = vmax.f32 %v765, %v766
      %v768 = vrot.slane %v767, 2
      %v769 = vmax.f32 %v767, %v768
      %v770 = vrot.slane %v769, 1
      %v771 = vmax.f32 %v769, %v770
      %v772 = vmul.f32 %v69, %v771
      %773 = vst.msk [vmem:[#allocation3] sm:$0x1] %vm61, %v772
    $region30: #{tpu_custom_call.1} parent=1 // loop_footer
      %s68 = sadd.s32 1, %s64
    $region31: #{tpu_custom_call.1} parent=1 // loop_footer_branch
      %63 = sbr.rel target = $region27
    $region32: #{tpu_custom_call.1} parent=1 // loop_exit
      _
    // Predicated region
    $region33: #{tpu_custom_call.1} parent=1 // pred_check
      _
    $region34: #{tpu_custom_call.1} parent=1 // pred_check_branch
      %775 = sbr.rel (0) target = $region36
    $region35: #{tpu_custom_call.1} parent=1 // pred_region
      %s777 = ssub.s32 128, 128
      %778 = vsyncadd [#allocation6], %s777
      %s780 = sshll.u32 [#allocation7], 4
      %s781 = int_to_ptr.vmem [resolvable:$true] %s780
      %783 = dma.vmem_to_hbm [thread:$0]  %s781, 128, %s5, [#allocation6]
    $region36: #{tpu_custom_call.1} parent=1 // pred_fallthru
      _
    // Predicated region
    $region37: #{tpu_custom_call.1} parent=1 // pred_check
      _
    $region38: #{tpu_custom_call.1} parent=1 // pred_check_branch
      %785 = sbr.rel (0) target = $region40
    $region39: #{tpu_custom_call.1} parent=1 // pred_region
      %786 = dma.done [#allocation6], 128
    $region40: #{tpu_custom_call.1} parent=1 // pred_fallthru
      _
    %787 = vsyncpa [#allocation5], 1
    %788 = vsyncpa [#allocation6], 1

</llo_original>
